<compile_context>
chip_gen: v5e
topology: v5e:2x2
jax: 0.10.0
libtpu: 0.0.40
codegen_flags: <defaults>
</compile_context>

<pallas_src>
import functools

import jax
import jax.numpy as jnp
from jax.experimental import pallas as pl
from jax.experimental.pallas import tpu as pltpu


def _conv_bn_relu_kernel(x_ref, w_ref, b_ref, o_ref, *, Wp, S_pad):
    # x_ref: (Bt, L, Cin)   zero-padded, row-major flattened samples
    # w_ref: (9, Cin, Cout) BN-folded taps, tap index = kh*3 + kw
    # b_ref: (1, Cout)      BN-folded bias (f32)
    # o_ref: (Bt, S_pad, Cout)
    Bt = x_ref.shape[0]
    Cin = x_ref.shape[2]
    Cout = o_ref.shape[2]
    M = Bt * S_pad

    acc = jnp.zeros((M, Cout), jnp.float32)
    for kh in range(3):
        for kw in range(3):
            off = kh * Wp + kw                       # static contiguous offset
            # Per-tap streamed load from VMEM; layout-free reshape (S_pad % 32 == 0).
            tap = x_ref[:, off:off + S_pad, :].reshape(M, Cin)
            acc = acc + jnp.dot(tap, w_ref[kh * 3 + kw],
                                preferred_element_type=jnp.float32)
    acc = acc + b_ref[...].astype(jnp.float32)       # single broadcast add
    o_ref[...] = jnp.maximum(acc, 0.0).reshape(Bt, S_pad, Cout).astype(o_ref.dtype)


def _vmem_capacity_bytes():
    try:
        info = pltpu.get_tpu_info()
        cap = getattr(info, "vmem_capacity_bytes", None)
        if cap:
            return int(cap)
    except Exception:
        pass
    return 64 * 1024 * 1024  # conservative fallback (v7x per-TensorCore VMEM)


def _pick_bt(batch, per_sample_bytes, budget_bytes):
    """Largest divisor of `batch` fitting the budget, preferring even grid counts."""
    bt = max(1, int(budget_bytes) // max(int(per_sample_bytes), 1))
    bt = min(bt, batch)
    while batch % bt:
        bt -= 1
    # Prefer an even number of grid steps so the "parallel" batch axis splits
    # evenly across v7x's two TensorCores (harmless on v5e/v6e).
    if batch >= 2:
        while bt > 1 and (batch // bt) % 2 != 0:
            bt -= 1
            while batch % bt:
                bt -= 1
    return bt


def single_conv(x, conv_w, conv_b, bn_gamma, bn_beta, bn_mean, bn_var,
                eps=1e-5, matmul_dtype=None):
    """x: (B, Cin, H, W). conv_w: (Cout, Cin, 3, 3). conv_b/bn_*: (Cout,)."""
    B, Cin, H, W = x.shape
    Cout = conv_w.shape[0]
    Wp = W + 2

    mm_dtype = jnp.dtype(matmul_dtype) if matmul_dtype is not None else jnp.dtype(x.dtype)

    # Fold eval-mode BatchNorm into the conv weights / bias (f32 math).
    scale = (bn_gamma / jnp.sqrt(bn_var + eps)).astype(jnp.float32)       # (Cout,)
    w_folded = conv_w.astype(jnp.float32) * scale[:, None, None, None]    # (Cout,Cin,3,3)
    b_folded = (conv_b.astype(jnp.float32) - bn_mean) * scale + bn_beta   # (Cout,)

    # (Cout,Cin,kh,kw) -> (kh,kw,Cin,Cout) -> (9,Cin,Cout), channels-last.
    w_taps = jnp.transpose(w_folded, (2, 3, 1, 0)).reshape(9, Cin, Cout).astype(mm_dtype)
    bias = b_folded.reshape(1, Cout).astype(jnp.float32)

    # Geometry: flattened padded rows; tap (kh,kw) = contiguous slice at kh*Wp+kw.
    def ru(a, m):
        return (a + m - 1) // m * m

    S = H * Wp                                  # valid (incl. 2 junk cols/row)
    S_pad = ru(S, 32)                           # layout-free reshape inside kernel
    need_rows = S_pad + 2 * Wp + 2              # last tap slice must stay in bounds
    h_extra = max(0, (need_rows - (H + 2) * Wp + Wp - 1) // Wp)
    L = (H + 2 + h_extra) * Wp

    # Single pad call: spatial halo + extra bottom zero rows folded together.
    x_nhwc = jnp.transpose(x, (0, 2, 3, 1)).astype(mm_dtype)
    x_pad = jnp.pad(x_nhwc, ((0, 0), (1, 1 + h_extra), (1, 1), (0, 0)))
    x_flat = x_pad.reshape(B, L, Cin)

    # VMEM budgeting (generation aware): blocks are double-buffered, weights and
    # bias are single-buffered residents, accumulator/tap live values included.
    in_isz = jnp.dtype(mm_dtype).itemsize
    out_isz = jnp.dtype(x.dtype).itemsize
    per_sample = (2 * L * Cin * in_isz            # double-buffered input block
                  + 2 * S_pad * Cout * out_isz    # double-buffered output block
                  + S_pad * Cout * 4              # f32 accumulator
                  + S_pad * Cin * in_isz)         # one live tap slice
    resident = 9 * Cin * Cout * in_isz + Cout * 4 # single-buffered weights + bias

    cap = _vmem_capacity_bytes()
    block_budget = max(4 << 20, min(24 << 20, cap // 2) - resident)
    Bt = _pick_bt(B, per_sample, block_budget)
    vmem_limit = int(min(cap - (8 << 20),
                         max(resident + Bt * per_sample + (4 << 20), 16 << 20)))

    out_flat = pl.pallas_call(
        functools.partial(_conv_bn_relu_kernel, Wp=Wp, S_pad=S_pad),
        out_shape=jax.ShapeDtypeStruct((B, S_pad, Cout), x.dtype),
        grid_spec=pltpu.PrefetchScalarGridSpec(
            num_scalar_prefetch=0,
            grid=(B // Bt,),
            in_specs=[
                pl.BlockSpec((Bt, L, Cin), lambda i: (i, 0, 0)),
                pl.BlockSpec((9, Cin, Cout), lambda i: (0, 0, 0),
                             pipeline_mode=pl.Buffered(1)),      # resident
                pl.BlockSpec((1, Cout), lambda i: (0, 0),
                             pipeline_mode=pl.Buffered(1)),      # resident
            ],
            out_specs=pl.BlockSpec((Bt, S_pad, Cout), lambda i: (i, 0, 0)),
        ),
        compiler_params=pltpu.CompilerParams(
            dimension_semantics=("parallel",),
            vmem_limit_bytes=vmem_limit),
    )(x_flat, w_taps, bias)

    # (B, S_pad, Cout) -> drop row padding and the 2 junk columns -> NCHW.
    out = out_flat[:, :S, :].reshape(B, H, Wp, Cout)[:, :, :W, :]
    return jnp.transpose(out, (0, 3, 1, 2)).astype(x.dtype)


def single_conv_ref(x, conv_w, conv_b, gamma, beta, mean, var, eps=1e-5):
    """Pure-JAX reference matching the PyTorch forward (eval-mode BN)."""
    y = jax.lax.conv_general_dilated(
        x, conv_w, window_strides=(1, 1), padding=((1, 1), (1, 1)),
        dimension_numbers=("NCHW", "OIHW", "NCHW"))
    y = y + conv_b[None, :, None, None]
    y = (y - mean[None, :, None, None]) / jnp.sqrt(var[None, :, None, None] + eps)
    y = y * gamma[None, :, None, None] + beta[None, :, None, None]
    return jnp.maximum(y, 0.0)


if __name__ == "__main__":
    B, Cin, Cout, H, W = 2, 4, 8, 16, 16

    key = jax.random.PRNGKey(0)
    ks = jax.random.split(key, 7)
    x = jax.random.normal(ks[0], (B, Cin, H, W), dtype=jnp.float32)
    conv_w = jax.random.normal(ks[1], (Cout, Cin, 3, 3), dtype=jnp.float32) * 0.1
    conv_b = jax.random.normal(ks[2], (Cout,), dtype=jnp.float32) * 0.1
    bn_gamma = 1.0 + 0.1 * jax.random.normal(ks[3], (Cout,), dtype=jnp.float32)
    bn_beta = 0.1 * jax.random.normal(ks[4], (Cout,), dtype=jnp.float32)
    bn_mean = 0.1 * jax.random.normal(ks[5], (Cout,), dtype=jnp.float32)
    bn_var = jnp.abs(jax.random.normal(ks[6], (Cout,), dtype=jnp.float32)) + 0.5

    ref = single_conv_ref(x, conv_w, conv_b, bn_gamma, bn_beta, bn_mean, bn_var)

    # Full-precision path (matches the f32 PyTorch module).
    out = single_conv(x, conv_w, conv_b, bn_gamma, bn_beta, bn_mean, bn_var)
    jax.block_until_ready(out)
    assert out.shape == (B, Cout, H, W)
    assert jnp.allclose(out, ref, atol=1e-4, rtol=1e-4), float(
        jnp.max(jnp.abs(out - ref)))

    # bf16 matmul path (perf knob from the review): f32 accumulate, loose check.
    out_bf16 = single_conv(x, conv_w, conv_b, bn_gamma, bn_beta, bn_mean, bn_var,
                           matmul_dtype=jnp.bfloat16)
    jax.block_until_ready(out_bf16)
    assert out_bf16.shape == (B, Cout, H, W)
    assert float(jnp.max(jnp.abs(out_bf16 - ref))) < 0.1

    print("KERNEL_OK")
</pallas_src>

<mosaic_0001>
module attributes {stable_mosaic.version = 11 : i64} {
  func.func @_conv_bn_relu_kernel(%arg0: i32, %arg1: memref<1x342x4xf32, #tpu.memory_space<vmem>>, %arg2: memref<9x4x8xf32, #tpu.memory_space<vmem>>, %arg3: memref<1x8xf32, #tpu.memory_space<vmem>>, %arg4: memref<1x288x8xf32, #tpu.memory_space<vmem>>) attributes {dimension_semantics = [#tpu.dimension_semantics<parallel>], iteration_bounds = array<i64: 2>, scalar_prefetch = 0 : i64, scratch_operands = 0 : i64, tpu.core_type = #tpu.core_type<tc>, window_params = [{transform_indices = @transform_0, window_bounds = array<i64: 1, 342, 4>}, {pipeline_mode = #tpu.pipeline_mode<synchronous>, transform_indices = @transform_1, window_bounds = array<i64: 9, 4, 8>}, {pipeline_mode = #tpu.pipeline_mode<synchronous>, transform_indices = @transform_2, window_bounds = array<i64: 1, 8>}, {transform_indices = @transform_3, window_bounds = array<i64: 1, 288, 8>}]} {
    %cst = arith.constant 0.000000e+00 : f32
    %0 = vector.broadcast %cst : f32 to vector<288x8xf32>
    %c0 = arith.constant 0 : index
    %c0_0 = arith.constant 0 : index
    %c0_1 = arith.constant 0 : index
    %1 = vector.load %arg1[%c0, %c0_0, %c0_1] : memref<1x342x4xf32, #tpu.memory_space<vmem>>, vector<1x288x4xf32>
    %2 = vector.shape_cast %1 : vector<1x288x4xf32> to vector<288x4xf32>
    %c0_2 = arith.constant 0 : index
    %c0_3 = arith.constant 0 : index
    %c0_4 = arith.constant 0 : index
    %3 = vector.load %arg2[%c0_2, %c0_3, %c0_4] : memref<9x4x8xf32, #tpu.memory_space<vmem>>, vector<1x4x8xf32>
    %4 = vector.shape_cast %3 : vector<1x4x8xf32> to vector<4x8xf32>
    %cst_5 = arith.constant dense<0.000000e+00> : vector<288x8xf32>
    %5 = tpu.matmul %2, %4, %cst_5 {dimension_numbers = #tpu.dot_dimension_numbers<[1], [0], [0], [1], [0, 0, 1, 1], [], []>} : vector<288x4xf32>, vector<4x8xf32>, vector<288x8xf32> -> vector<288x8xf32>
    %6 = arith.addf %0, %5 : vector<288x8xf32>
    %c0_6 = arith.constant 0 : index
    %c1 = arith.constant 1 : index
    %c0_7 = arith.constant 0 : index
    %7 = vector.load %arg1[%c0_6, %c1, %c0_7] : memref<1x342x4xf32, #tpu.memory_space<vmem>>, vector<1x288x4xf32>
    %8 = vector.shape_cast %7 : vector<1x288x4xf32> to vector<288x4xf32>
    %c1_8 = arith.constant 1 : index
    %c0_9 = arith.constant 0 : index
    %c0_10 = arith.constant 0 : index
    %9 = vector.load %arg2[%c1_8, %c0_9, %c0_10] : memref<9x4x8xf32, #tpu.memory_space<vmem>>, vector<1x4x8xf32>
    %10 = vector.shape_cast %9 : vector<1x4x8xf32> to vector<4x8xf32>
    %cst_11 = arith.constant dense<0.000000e+00> : vector<288x8xf32>
    %11 = tpu.matmul %8, %10, %cst_11 {dimension_numbers = #tpu.dot_dimension_numbers<[1], [0], [0], [1], [0, 0, 1, 1], [], []>} : vector<288x4xf32>, vector<4x8xf32>, vector<288x8xf32> -> vector<288x8xf32>
    %12 = arith.addf %6, %11 : vector<288x8xf32>
    %c0_12 = arith.constant 0 : index
    %c2 = arith.constant 2 : index
    %c0_13 = arith.constant 0 : index
    %13 = vector.load %arg1[%c0_12, %c2, %c0_13] : memref<1x342x4xf32, #tpu.memory_space<vmem>>, vector<1x288x4xf32>
    %14 = vector.shape_cast %13 : vector<1x288x4xf32> to vector<288x4xf32>
    %c2_14 = arith.constant 2 : index
    %c0_15 = arith.constant 0 : index
    %c0_16 = arith.constant 0 : index
    %15 = vector.load %arg2[%c2_14, %c0_15, %c0_16] : memref<9x4x8xf32, #tpu.memory_space<vmem>>, vector<1x4x8xf32>
    %16 = vector.shape_cast %15 : vector<1x4x8xf32> to vector<4x8xf32>
    %cst_17 = arith.constant dense<0.000000e+00> : vector<288x8xf32>
    %17 = tpu.matmul %14, %16, %cst_17 {dimension_numbers = #tpu.dot_dimension_numbers<[1], [0], [0], [1], [0, 0, 1, 1], [], []>} : vector<288x4xf32>, vector<4x8xf32>, vector<288x8xf32> -> vector<288x8xf32>
    %18 = arith.addf %12, %17 : vector<288x8xf32>
    %c0_18 = arith.constant 0 : index
    %c18 = arith.constant 18 : index
    %c0_19 = arith.constant 0 : index
    %19 = vector.load %arg1[%c0_18, %c18, %c0_19] : memref<1x342x4xf32, #tpu.memory_space<vmem>>, vector<1x288x4xf32>
    %20 = vector.shape_cast %19 : vector<1x288x4xf32> to vector<288x4xf32>
    %c3 = arith.constant 3 : index
    %c0_20 = arith.constant 0 : index
    %c0_21 = arith.constant 0 : index
    %21 = vector.load %arg2[%c3, %c0_20, %c0_21] : memref<9x4x8xf32, #tpu.memory_space<vmem>>, vector<1x4x8xf32>
    %22 = vector.shape_cast %21 : vector<1x4x8xf32> to vector<4x8xf32>
    %cst_22 = arith.constant dense<0.000000e+00> : vector<288x8xf32>
    %23 = tpu.matmul %20, %22, %cst_22 {dimension_numbers = #tpu.dot_dimension_numbers<[1], [0], [0], [1], [0, 0, 1, 1], [], []>} : vector<288x4xf32>, vector<4x8xf32>, vector<288x8xf32> -> vector<288x8xf32>
    %24 = arith.addf %18, %23 : vector<288x8xf32>
    %c0_23 = arith.constant 0 : index
    %c19 = arith.constant 19 : index
    %c0_24 = arith.constant 0 : index
    %25 = vector.load %arg1[%c0_23, %c19, %c0_24] : memref<1x342x4xf32, #tpu.memory_space<vmem>>, vector<1x288x4xf32>
    %26 = vector.shape_cast %25 : vector<1x288x4xf32> to vector<288x4xf32>
    %c4 = arith.constant 4 : index
    %c0_25 = arith.constant 0 : index
    %c0_26 = arith.constant 0 : index
    %27 = vector.load %arg2[%c4, %c0_25, %c0_26] : memref<9x4x8xf32, #tpu.memory_space<vmem>>, vector<1x4x8xf32>
    %28 = vector.shape_cast %27 : vector<1x4x8xf32> to vector<4x8xf32>
    %cst_27 = arith.constant dense<0.000000e+00> : vector<288x8xf32>
    %29 = tpu.matmul %26, %28, %cst_27 {dimension_numbers = #tpu.dot_dimension_numbers<[1], [0], [0], [1], [0, 0, 1, 1], [], []>} : vector<288x4xf32>, vector<4x8xf32>, vector<288x8xf32> -> vector<288x8xf32>
    %30 = arith.addf %24, %29 : vector<288x8xf32>
    %c0_28 = arith.constant 0 : index
    %c20 = arith.constant 20 : index
    %c0_29 = arith.constant 0 : index
    %31 = vector.load %arg1[%c0_28, %c20, %c0_29] : memref<1x342x4xf32, #tpu.memory_space<vmem>>, vector<1x288x4xf32>
    %32 = vector.shape_cast %31 : vector<1x288x4xf32> to vector<288x4xf32>
    %c5 = arith.constant 5 : index
    %c0_30 = arith.constant 0 : index
    %c0_31 = arith.constant 0 : index
    %33 = vector.load %arg2[%c5, %c0_30, %c0_31] : memref<9x4x8xf32, #tpu.memory_space<vmem>>, vector<1x4x8xf32>
    %34 = vector.shape_cast %33 : vector<1x4x8xf32> to vector<4x8xf32>
    %cst_32 = arith.constant dense<0.000000e+00> : vector<288x8xf32>
    %35 = tpu.matmul %32, %34, %cst_32 {dimension_numbers = #tpu.dot_dimension_numbers<[1], [0], [0], [1], [0, 0, 1, 1], [], []>} : vector<288x4xf32>, vector<4x8xf32>, vector<288x8xf32> -> vector<288x8xf32>
    %36 = arith.addf %30, %35 : vector<288x8xf32>
    %c0_33 = arith.constant 0 : index
    %c36 = arith.constant 36 : index
    %c0_34 = arith.constant 0 : index
    %37 = vector.load %arg1[%c0_33, %c36, %c0_34] : memref<1x342x4xf32, #tpu.memory_space<vmem>>, vector<1x288x4xf32>
    %38 = vector.shape_cast %37 : vector<1x288x4xf32> to vector<288x4xf32>
    %c6 = arith.constant 6 : index
    %c0_35 = arith.constant 0 : index
    %c0_36 = arith.constant 0 : index
    %39 = vector.load %arg2[%c6, %c0_35, %c0_36] : memref<9x4x8xf32, #tpu.memory_space<vmem>>, vector<1x4x8xf32>
    %40 = vector.shape_cast %39 : vector<1x4x8xf32> to vector<4x8xf32>
    %cst_37 = arith.constant dense<0.000000e+00> : vector<288x8xf32>
    %41 = tpu.matmul %38, %40, %cst_37 {dimension_numbers = #tpu.dot_dimension_numbers<[1], [0], [0], [1], [0, 0, 1, 1], [], []>} : vector<288x4xf32>, vector<4x8xf32>, vector<288x8xf32> -> vector<288x8xf32>
    %42 = arith.addf %36, %41 : vector<288x8xf32>
    %c0_38 = arith.constant 0 : index
    %c37 = arith.constant 37 : index
    %c0_39 = arith.constant 0 : index
    %43 = vector.load %arg1[%c0_38, %c37, %c0_39] : memref<1x342x4xf32, #tpu.memory_space<vmem>>, vector<1x288x4xf32>
    %44 = vector.shape_cast %43 : vector<1x288x4xf32> to vector<288x4xf32>
    %c7 = arith.constant 7 : index
    %c0_40 = arith.constant 0 : index
    %c0_41 = arith.constant 0 : index
    %45 = vector.load %arg2[%c7, %c0_40, %c0_41] : memref<9x4x8xf32, #tpu.memory_space<vmem>>, vector<1x4x8xf32>
    %46 = vector.shape_cast %45 : vector<1x4x8xf32> to vector<4x8xf32>
    %cst_42 = arith.constant dense<0.000000e+00> : vector<288x8xf32>
    %47 = tpu.matmul %44, %46, %cst_42 {dimension_numbers = #tpu.dot_dimension_numbers<[1], [0], [0], [1], [0, 0, 1, 1], [], []>} : vector<288x4xf32>, vector<4x8xf32>, vector<288x8xf32> -> vector<288x8xf32>
    %48 = arith.addf %42, %47 : vector<288x8xf32>
    %c0_43 = arith.constant 0 : index
    %c38 = arith.constant 38 : index
    %c0_44 = arith.constant 0 : index
    %49 = vector.load %arg1[%c0_43, %c38, %c0_44] : memref<1x342x4xf32, #tpu.memory_space<vmem>>, vector<1x288x4xf32>
    %50 = vector.shape_cast %49 : vector<1x288x4xf32> to vector<288x4xf32>
    %c8 = arith.constant 8 : index
    %c0_45 = arith.constant 0 : index
    %c0_46 = arith.constant 0 : index
    %51 = vector.load %arg2[%c8, %c0_45, %c0_46] : memref<9x4x8xf32, #tpu.memory_space<vmem>>, vector<1x4x8xf32>
    %52 = vector.shape_cast %51 : vector<1x4x8xf32> to vector<4x8xf32>
    %cst_47 = arith.constant dense<0.000000e+00> : vector<288x8xf32>
    %53 = tpu.matmul %50, %52, %cst_47 {dimension_numbers = #tpu.dot_dimension_numbers<[1], [0], [0], [1], [0, 0, 1, 1], [], []>} : vector<288x4xf32>, vector<4x8xf32>, vector<288x8xf32> -> vector<288x8xf32>
    %54 = arith.addf %48, %53 : vector<288x8xf32>
    %c0_48 = arith.constant 0 : index
    %c0_49 = arith.constant 0 : index
    %55 = vector.load %arg3[%c0_48, %c0_49] : memref<1x8xf32, #tpu.memory_space<vmem>>, vector<1x8xf32>
    %56 = vector.broadcast %55 : vector<1x8xf32> to vector<288x8xf32>
    %57 = arith.addf %54, %56 : vector<288x8xf32>
    %cst_50 = arith.constant 0.000000e+00 : f32
    %58 = vector.broadcast %cst_50 : f32 to vector<288x8xf32>
    %59 = arith.maximumf %57, %58 : vector<288x8xf32>
    %60 = vector.shape_cast %59 : vector<288x8xf32> to vector<1x288x8xf32>
    %c0_51 = arith.constant 0 : index
    %c0_52 = arith.constant 0 : index
    %c0_53 = arith.constant 0 : index
    %61 = vector.load %arg4[%c0_51, %c0_52, %c0_53] : memref<1x288x8xf32, #tpu.memory_space<vmem>>, vector<1x288x8xf32>
    tpu.vector_store %arg4[%c0_51, %c0_52, %c0_53], %60 {strides = array<i32>} : memref<1x288x8xf32, #tpu.memory_space<vmem>>, vector<1x288x8xf32>,
    return
  }
  func.func @transform_0(%arg0: i32) -> (i32, i32, i32) {
    %c0_i32 = arith.constant 0 : i32
    %c0_i32_0 = arith.constant 0 : i32
    %c0_i32_1 = arith.constant 0 : i32
    return %arg0, %c0_i32, %c0_i32_0 : i32, i32, i32
  }
  func.func @transform_1(%arg0: i32) -> (i32, i32, i32) {
    %c0_i32 = arith.constant 0 : i32
    %c0_i32_0 = arith.constant 0 : i32
    %c0_i32_1 = arith.constant 0 : i32
    %c0_i32_2 = arith.constant 0 : i32
    return %c0_i32, %c0_i32_0, %c0_i32_1 : i32, i32, i32
  }
  func.func @transform_2(%arg0: i32) -> (i32, i32) {
    %c0_i32 = arith.constant 0 : i32
    %c0_i32_0 = arith.constant 0 : i32
    %c0_i32_1 = arith.constant 0 : i32
    return %c0_i32, %c0_i32_0 : i32, i32
  }
  func.func @transform_3(%arg0: i32) -> (i32, i32, i32) {
    %c0_i32 = arith.constant 0 : i32
    %c0_i32_0 = arith.constant 0 : i32
    %c0_i32_1 = arith.constant 0 : i32
    return %arg0, %c0_i32, %c0_i32_0 : i32, i32, i32
  }
}

</mosaic_0001>

<llo_original>
// kernel: tpu_custom_call.1
$region0: #{tpu_custom_call.1}
  #allocation0 [shape = 'u32[]', space=smem, size = 0x4, offset = 0x4, fixed_abs, tag = 'smem constant byte address 0x4 - core index']
  #allocation1 [shape = 'u32[72,128]{1,0:T(1,128)}', space=vmem, size = 0x9000, scoped, tag = 'internal scratch']
  %s0 = inlined_call_operand.vmem [shape: f32[2,342,4], index: 0, kind: input, shape index: {}]
  %s1 = inlined_call_operand.vmem [shape: f32[9,4,8], index: 1, kind: input, shape index: {}]
  %s2 = inlined_call_operand.vmem [shape: f32[1,8], index: 2, kind: input, shape index: {}]
  %s3 = inlined_call_operand.vmem [shape: f32[2,288,8], index: 3, kind: output, shape index: {}]
  %s4 = sld [smem:[#allocation0]]
  $region45: #{tpu_custom_call.1} parent=0
    _
  %s6 = ssub.s32 1, %s4
  %s7 = scalar_select 0, %s6, %s4
  loop: start=0, step=1, limit=4
  $region2: #{tpu_custom_call.1} parent=0 // loop_pre_header
    _
  $region3: #{tpu_custom_call.1} parent=0 // loop_header
    %s9 = sphi 0, %s13
    %p10 = scmp.ge.s32.totalorder %s9, 4
    %s19 = sphi 0, %s21
    %s22 = sphi 0, %s19
    %s23 = sphi 0, %s22
    %s39 = sphi 0, %s23
    %s43 = sphi 0, %s43
    %s45 = sphi 0, %s43
    %s46 = sphi 0, %s45
    %s60 = sphi 0, %s46
    %s64 = sphi 0, %s64
    %s66 = sphi 0, %s64
    %s67 = sphi 0, %s66
    %s81 = sphi 0, %s67
    %s87 = sphi 0, %s89
    %s90 = sphi 0, %s87
    %s91 = sphi 0, %s90
    %s107 = sphi 0, %s91
  $region4: #{tpu_custom_call.1} parent=0 // loop_header_branch
    %12 = sbr.rel (%p10) target = $region8
  $region5: #{tpu_custom_call.1} parent=0 // loop_body
    %s14 = ssub.s32 %s9, 1
    %s15 = ssub.s32 %s9, 2
    %s16 = sadd.s32 %s9, 1
    %s17 = ssub.s32 %s9, %s16
    %p18 = scmp.eq.s32.totalorder %s17, 0
    %s20 = sadd.s32 %s19, 1
    %s21 = scalar_select %p18, %s19, %s20
    %p24 = pneg %p18
    %p25 = scmp.eq.s32.totalorder %s9, 1
    %p26 = por %p24, %p25
    %p27 = scmp.ne.s32.totalorder %s19, %s22
    %p28 = scmp.eq.s32.totalorder %s9, 0
    %p29 = por %p27, %p28
    %p30 = scmp.ne.s32.totalorder %s19, %s22
    %p31 = scmp.eq.s32.totalorder %s14, 1
    %p32 = por %p30, %p31
    %p33 = scmp.ne.s32.totalorder %s22, %s23
    %p34 = scmp.eq.s32.totalorder %s14, 0
    %p35 = por %p33, %p34
    %p36 = scmp.ne.s32.totalorder %s22, %s23
    %p37 = scmp.eq.s32.totalorder %s15, 1
    %p38 = por %p36, %p37
    %p40 = scmp.ne.s32.totalorder %s23, %s39
    %p41 = scmp.eq.s32.totalorder %s15, 0
    %p42 = por %p40, %p41
    %s44 = sadd.s32 %s43, 1
    %p47 = scmp.eq.s32.totalorder %s9, 1
    %p48 = scmp.ne.s32.totalorder %s43, %s45
    %p49 = scmp.eq.s32.totalorder %s9, 0
    %p50 = por %p48, %p49
    %p51 = scmp.ne.s32.totalorder %s43, %s45
    %p52 = scmp.eq.s32.totalorder %s14, 1
    %p53 = por %p51, %p52
    %p54 = scmp.ne.s32.totalorder %s45, %s46
    %p55 = scmp.eq.s32.totalorder %s14, 0
    %p56 = por %p54, %p55
    %p57 = scmp.ne.s32.totalorder %s45, %s46
    %p58 = scmp.eq.s32.totalorder %s15, 1
    %p59 = por %p57, %p58
    %p61 = scmp.ne.s32.totalorder %s46, %s60
    %p62 = scmp.eq.s32.totalorder %s15, 0
    %p63 = por %p61, %p62
    %s65 = sadd.s32 %s64, 1
    %p68 = scmp.eq.s32.totalorder %s9, 1
    %p69 = scmp.ne.s32.totalorder %s64, %s66
    %p70 = scmp.eq.s32.totalorder %s9, 0
    %p71 = por %p69, %p70
    %p72 = scmp.ne.s32.totalorder %s64, %s66
    %p73 = scmp.eq.s32.totalorder %s14, 1
    %p74 = por %p72, %p73
    %p75 = scmp.ne.s32.totalorder %s66, %s67
    %p76 = scmp.eq.s32.totalorder %s14, 0
    %p77 = por %p75, %p76
    %p78 = scmp.ne.s32.totalorder %s66, %s67
    %p79 = scmp.eq.s32.totalorder %s15, 1
    %p80 = por %p78, %p79
    %p82 = scmp.ne.s32.totalorder %s67, %s81
    %p83 = scmp.eq.s32.totalorder %s15, 0
    %p84 = por %p82, %p83
    %s85 = ssub.s32 %s9, %s16
    %p86 = scmp.eq.s32.totalorder %s85, 0
    %s88 = sadd.s32 %s87, 1
    %s89 = scalar_select %p86, %s87, %s88
    %p92 = pneg %p86
    %p93 = scmp.eq.s32.totalorder %s9, 1
    %p94 = por %p92, %p93
    %p95 = scmp.ne.s32.totalorder %s87, %s90
    %p96 = scmp.eq.s32.totalorder %s9, 0
    %p97 = por %p95, %p96
    %p98 = scmp.ne.s32.totalorder %s87, %s90
    %p99 = scmp.eq.s32.totalorder %s14, 1
    %p100 = por %p98, %p99
    %p101 = scmp.ne.s32.totalorder %s90, %s91
    %p102 = scmp.eq.s32.totalorder %s14, 0
    %p103 = por %p101, %p102
    %p104 = scmp.ne.s32.totalorder %s90, %s91
    %p105 = scmp.eq.s32.totalorder %s15, 1
    %p106 = por %p104, %p105
    %p108 = scmp.ne.s32.totalorder %s91, %s107
    %p109 = scmp.eq.s32.totalorder %s15, 0
    %p110 = por %p108, %p109
    %p111 = scmp.le.s32.totalorder 1, %s9
    %p112 = scmp.lt.s32.totalorder %s9, 3
    %p113 = pnand %p111, %p112
    %p114 = pneg %p113
    // Predicated region
    $region9: #{tpu_custom_call.1} parent=5 // pred_check
      _
    $region10: #{tpu_custom_call.1} parent=5 // pred_check_branch
      %116 = sbr.rel (%p113) target = $region12
    $region11: #{tpu_custom_call.1} parent=5 // pred_region
      %s117 = ssub.s32 %s9, 1
      // Predicated region
      $region13: #{tpu_custom_call.1} parent=11 // pred_check
        %p118 = pneg %p56
      $region14: #{tpu_custom_call.1} parent=11 // pred_check_branch
        %120 = sbr.rel (%p118) target = $region16
      $region15: #{tpu_custom_call.1} parent=11 // pred_region
        _
      $region16: #{tpu_custom_call.1} parent=11 // pred_fallthru
        _
      // Predicated region
      $region17: #{tpu_custom_call.1} parent=11 // pred_check
        %p121 = pneg %p77
      $region18: #{tpu_custom_call.1} parent=11 // pred_check_branch
        %123 = sbr.rel (%p121) target = $region20
      $region19: #{tpu_custom_call.1} parent=11 // pred_region
        _
      $region20: #{tpu_custom_call.1} parent=11 // pred_fallthru
        _
    $region12: #{tpu_custom_call.1} parent=5 // pred_fallthru
      _
    %p124 = scmp.lt.s32.totalorder %s9, 2
    // Predicated region
    $region21: #{tpu_custom_call.1} parent=5 // pred_check
      %p125 = pneg %p124
    $region22: #{tpu_custom_call.1} parent=5 // pred_check_branch
      %127 = sbr.rel (%p125) target = $region24
    $region23: #{tpu_custom_call.1} parent=5 // pred_region
      // Predicated region
      $region25: #{tpu_custom_call.1} parent=23 // pred_check
        %p128 = pneg %p29
      $region26: #{tpu_custom_call.1} parent=23 // pred_check_branch
        %130 = sbr.rel (%p128) target = $region28
      $region27: #{tpu_custom_call.1} parent=23 // pred_region
        %p131 = scmp.lt.s32.totalorder %s9, 1
        %s132 = scalar_select %p131, %s9, 1
        %s133 = smul.addr %s132, 43
        %s134 = smul.addr %s133, 8
        %s135 = scalar_lea.vmem %s0, %s134
      $region28: #{tpu_custom_call.1} parent=23 // pred_fallthru
        _
    $region24: #{tpu_custom_call.1} parent=5 // pred_fallthru
      _
    %p136 = scmp.le.s32.totalorder 1, %s9
    %p137 = scmp.lt.s32.totalorder %s9, 3
    %p138 = pnand %p136, %p137
    %p139 = pneg %p138
    // Predicated region
    $region29: #{tpu_custom_call.1} parent=5 // pred_check
      _
    $region30: #{tpu_custom_call.1} parent=5 // pred_check_branch
      %141 = sbr.rel (%p138) target = $region32
    $region31: #{tpu_custom_call.1} parent=5 // pred_region
      %s142 = ssub.s32 %s9, 1
      %p143 = scmp.lt.s32.totalorder %s14, 1
      %s144 = scalar_select %p143, %s14, 1
      %s145 = smul.addr %s144, 43
      %s146 = smul.addr %s145, 8
      %s147 = scalar_lea.vmem %s0, %s146
      %p148 = pneg %p35
      %p149 = pneg %p32
      %p150 = pneg %p56
      %p151 = pneg %p53
      %p152 = pneg %p77
      %p153 = pneg %p74
      %p154 = pneg %p103
      %p155 = pneg %p100
      %p156 = scmp.lt.s32.totalorder %s14, 1
      %s157 = scalar_select %p156, %s14, 1
      %s158 = smul.addr %s157, 36
      %s159 = smul.addr %s158, 8
      %s160 = scalar_lea.vmem %s3, %s159
      %p161 = scmp.lt.s32.totalorder %s14, 1
      %s162 = scalar_select %p161, %s14, 1
      %s163 = smul.addr %s162, 43
      %s164 = smul.addr %s163, 8
      %s165 = scalar_lea.vmem %s0, %s164
      %p166 = scmp.lt.s32.totalorder %s14, 1
      %s167 = scalar_select %p166, %s14, 1
      %s168 = smul.addr %s167, 36
      %s169 = smul.addr %s168, 8
      %s170 = scalar_lea.vmem %s3, %s169
      %v171 = vld [vmem:[%s165] sm:$0xff]
      %v172 = vld [vmem:[%s165 + $0x8] sm:$0xff]
      %v173 = vld [vmem:[%s165 + $0x10] sm:$0xff]
      %v174 = vld [vmem:[%s165 + $0x18] sm:$0xff]
      %v175 = vld [vmem:[%s165 + $0x20] sm:$0xff]
      %v176 = vld [vmem:[%s165 + $0x28] sm:$0xff]
      %v177 = vld [vmem:[%s165 + $0x30] sm:$0xff]
      %v178 = vld [vmem:[%s165 + $0x38] sm:$0xff]
      %v179 = vld [vmem:[%s165 + $0x40] sm:$0xff]
      %v180 = vld [vmem:[%s165 + $0x48] sm:$0xff]
      %v181 = vld [vmem:[%s165 + $0x50] sm:$0xff]
      %v182 = vld [vmem:[%s165 + $0x58] sm:$0xff]
      %v183 = vld [vmem:[%s165 + $0x60] sm:$0xff]
      %v184 = vld [vmem:[%s165 + $0x68] sm:$0xff]
      %v185 = vld [vmem:[%s165 + $0x70] sm:$0xff]
      %v186 = vld [vmem:[%s165 + $0x78] sm:$0xff]
      %v187 = vld [vmem:[%s165 + $0x80] sm:$0xff]
      %v188 = vld [vmem:[%s165 + $0x88] sm:$0xff]
      %v189 = vld [vmem:[%s165 + $0x90] sm:$0xff]
      %v190 = vld [vmem:[%s165 + $0x98] sm:$0xff]
      %v191 = vld [vmem:[%s165 + $0xa0] sm:$0xff]
      %v192 = vld [vmem:[%s165 + $0xa8] sm:$0xff]
      %v193 = vld [vmem:[%s165 + $0xb0] sm:$0xff]
      %v194 = vld [vmem:[%s165 + $0xb8] sm:$0xff]
      %v195 = vld [vmem:[%s165 + $0xc0] sm:$0xff]
      %v196 = vld [vmem:[%s165 + $0xc8] sm:$0xff]
      %v197 = vld [vmem:[%s165 + $0xd0] sm:$0xff]
      %v198 = vld [vmem:[%s165 + $0xd8] sm:$0xff]
      %v199 = vld [vmem:[%s165 + $0xe0] sm:$0xff]
      %v200 = vld [vmem:[%s165 + $0xe8] sm:$0xff]
      %v201 = vld [vmem:[%s165 + $0xf0] sm:$0xff]
      %v202 = vld [vmem:[%s165 + $0xf8] sm:$0xff]
      %v203 = vld [vmem:[%s165 + $0x100] sm:$0xff]
      %v204 = vld [vmem:[%s165 + $0x108] sm:$0xff]
      %v205 = vld [vmem:[%s165 + $0x110] sm:$0xff]
      %v206 = vld [vmem:[%s165 + $0x118] sm:$0xff]
      %v207 = vld [vmem:[%s1] sm:$0xf]
      %v208 = vld [vmem:[%s165 + $0x1] sm:$0xff]
      %v209 = vld [vmem:[%s165 + $0x9] sm:$0xff]
      %v210 = vld [vmem:[%s165 + $0x11] sm:$0xff]
      %v211 = vld [vmem:[%s165 + $0x19] sm:$0xff]
      %v212 = vld [vmem:[%s165 + $0x21] sm:$0xff]
      %v213 = vld [vmem:[%s165 + $0x29] sm:$0xff]
      %v214 = vld [vmem:[%s165 + $0x31] sm:$0xff]
      %v215 = vld [vmem:[%s165 + $0x39] sm:$0xff]
      %v216 = vld [vmem:[%s165 + $0x41] sm:$0xff]
      %v217 = vld [vmem:[%s165 + $0x49] sm:$0xff]
      %v218 = vld [vmem:[%s165 + $0x51] sm:$0xff]
      %v219 = vld [vmem:[%s165 + $0x59] sm:$0xff]
      %v220 = vld [vmem:[%s165 + $0x61] sm:$0xff]
      %v221 = vld [vmem:[%s165 + $0x69] sm:$0xff]
      %v222 = vld [vmem:[%s165 + $0x71] sm:$0xff]
      %v223 = vld [vmem:[%s165 + $0x79] sm:$0xff]
      %v224 = vld [vmem:[%s165 + $0x81] sm:$0xff]
      %v225 = vld [vmem:[%s165 + $0x89] sm:$0xff]
      %v226 = vld [vmem:[%s165 + $0x91] sm:$0xff]
      %v227 = vld [vmem:[%s165 + $0x99] sm:$0xff]
      %v228 = vld [vmem:[%s165 + $0xa1] sm:$0xff]
      %v229 = vld [vmem:[%s165 + $0xa9] sm:$0xff]
      %v230 = vld [vmem:[%s165 + $0xb1] sm:$0xff]
      %v231 = vld [vmem:[%s165 + $0xb9] sm:$0xff]
      %v232 = vld [vmem:[%s165 + $0xc1] sm:$0xff]
      %v233 = vld [vmem:[%s165 + $0xc9] sm:$0xff]
      %v234 = vld [vmem:[%s165 + $0xd1] sm:$0xff]
      %v235 = vld [vmem:[%s165 + $0xd9] sm:$0xff]
      %v236 = vld [vmem:[%s165 + $0xe1] sm:$0xff]
      %v237 = vld [vmem:[%s165 + $0xe9] sm:$0xff]
      %v238 = vld [vmem:[%s165 + $0xf1] sm:$0xff]
      %v239 = vld [vmem:[%s165 + $0xf9] sm:$0xff]
      %v240 = vld [vmem:[%s165 + $0x101] sm:$0xff]
      %v241 = vld [vmem:[%s165 + $0x109] sm:$0xff]
      %v242 = vld [vmem:[%s165 + $0x111] sm:$0xff]
      %v243 = vld [vmem:[%s165 + $0x119] sm:$0xff]
      %s244 = scalar_lea.vmem %s1, 4
      %v245 = vld [vmem:[%s244] sm:$0xf]
      %vm246 = vcmask 31744
      %v248 = vsel %vm246, %v208, 0
      %v251 = vsel %vm246, %v209, 0
      %v254 = vsel %vm246, %v210, 0
      %v257 = vsel %vm246, %v211, 0
      %v260 = vsel %vm246, %v212, 0
      %v263 = vsel %vm246, %v213, 0
      %v266 = vsel %vm246, %v214, 0
      %v269 = vsel %vm246, %v215, 0
      %v272 = vsel %vm246, %v216, 0
      %v275 = vsel %vm246, %v217, 0
      %v278 = vsel %vm246, %v218, 0
      %v281 = vsel %vm246, %v219, 0
      %v284 = vsel %vm246, %v220, 0
      %v287 = vsel %vm246, %v221, 0
      %v290 = vsel %vm246, %v222, 0
      %v293 = vsel %vm246, %v223, 0
      %v296 = vsel %vm246, %v224, 0
      %v299 = vsel %vm246, %v225, 0
      %v302 = vsel %vm246, %v226, 0
      %v305 = vsel %vm246, %v227, 0
      %v308 = vsel %vm246, %v228, 0
      %v311 = vsel %vm246, %v229, 0
      %v314 = vsel %vm246, %v230, 0
      %v317 = vsel %vm246, %v231, 0
      %v320 = vsel %vm246, %v232, 0
      %v323 = vsel %vm246, %v233, 0
      %v326 = vsel %vm246, %v234, 0
      %v329 = vsel %vm246, %v235, 0
      %v332 = vsel %vm246, %v236, 0
      %v335 = vsel %vm246, %v237, 0
      %v338 = vsel %vm246, %v238, 0
      %v341 = vsel %vm246, %v239, 0
      %v344 = vsel %vm246, %v240, 0
      %v347 = vsel %vm246, %v241, 0
      %v350 = vsel %vm246, %v242, 0
      %v353 = vsel %vm246, %v243, 0
      %vm355 = vcmask 1043456
      %v357 = vsel %vm355, %v245, 0
      %359 = vmatpush.msra.mxu0 0.0
      %360 = vmatpush.msra.mxu0 0.0
      %361 = vmatpush.msra.mxu0 0.0
      %362 = vmatpush.msra.mxu0 0.0
      %363 = vmatpush.msra.mxu0 0.0
      %364 = vmatpush.msra.mxu0 0.0
      %365 = vmatpush.msra.mxu0 0.0
      %366 = vmatpush.msra.mxu0 0.0
      %367 = vmatpush.msra.mxu0 0.0
      %368 = vmatpush.msra.mxu0 0.0
      %369 = vmatpush.msra.mxu0 0.0
      %370 = vmatpush.msra.mxu0 0.0
      %371 = vmatpush.msra.mxu0 0.0
      %372 = vmatpush.msra.mxu0 0.0
      %373 = vmatpush.msra.mxu0 0.0
      %374 = vmatpush.msra.mxu0 %v357
      %375 = vmatmul.f32.gmra.mxu0 %v248
      %v376 = vpop.f32.mrf.mxu0
      %v377 = vadd.f32 0.0, %v376
      %378 = vmatmul.f32.gmra.mxu0 %v251
      %v379 = vpop.f32.mrf.mxu0
      %v380 = vadd.f32 0.0, %v379
      %381 = vmatmul.f32.gmra.mxu0 %v254
      %v382 = vpop.f32.mrf.mxu0
      %v383 = vadd.f32 0.0, %v382
      %384 = vmatmul.f32.gmra.mxu0 %v257
      %v385 = vpop.f32.mrf.mxu0
      %v386 = vadd.f32 0.0, %v385
      %387 = vmatmul.f32.gmra.mxu0 %v260
      %v388 = vpop.f32.mrf.mxu0
      %v389 = vadd.f32 0.0, %v388
      %390 = vmatmul.f32.gmra.mxu0 %v263
      %v391 = vpop.f32.mrf.mxu0
      %v392 = vadd.f32 0.0, %v391
      %393 = vmatmul.f32.gmra.mxu0 %v266
      %v394 = vpop.f32.mrf.mxu0
      %v395 = vadd.f32 0.0, %v394
      %396 = vmatmul.f32.gmra.mxu0 %v269
      %v397 = vpop.f32.mrf.mxu0
      %v398 = vadd.f32 0.0, %v397
      %399 = vmatmul.f32.gmra.mxu0 %v272
      %v400 = vpop.f32.mrf.mxu0
      %v401 = vadd.f32 0.0, %v400
      %402 = vmatmul.f32.gmra.mxu0 %v275
      %v403 = vpop.f32.mrf.mxu0
      %v404 = vadd.f32 0.0, %v403
      %405 = vmatmul.f32.gmra.mxu0 %v278
      %v406 = vpop.f32.mrf.mxu0
      %v407 = vadd.f32 0.0, %v406
      %408 = vmatmul.f32.gmra.mxu0 %v281
      %v409 = vpop.f32.mrf.mxu0
      %v410 = vadd.f32 0.0, %v409
      %411 = vmatmul.f32.gmra.mxu0 %v284
      %v412 = vpop.f32.mrf.mxu0
      %v413 = vadd.f32 0.0, %v412
      %414 = vmatmul.f32.gmra.mxu0 %v287
      %v415 = vpop.f32.mrf.mxu0
      %v416 = vadd.f32 0.0, %v415
      %417 = vmatmul.f32.gmra.mxu0 %v290
      %v418 = vpop.f32.mrf.mxu0
      %v419 = vadd.f32 0.0, %v418
      %420 = vmatmul.f32.gmra.mxu0 %v293
      %v421 = vpop.f32.mrf.mxu0
      %v422 = vadd.f32 0.0, %v421
      %423 = vmatmul.f32.gmra.mxu0 %v296
      %v424 = vpop.f32.mrf.mxu0
      %v425 = vadd.f32 0.0, %v424
      %426 = vmatmul.f32.gmra.mxu0 %v299
      %v427 = vpop.f32.mrf.mxu0
      %v428 = vadd.f32 0.0, %v427
      %429 = vmatmul.f32.gmra.mxu0 %v302
      %v430 = vpop.f32.mrf.mxu0
      %v431 = vadd.f32 0.0, %v430
      %432 = vmatmul.f32.gmra.mxu0 %v305
      %v433 = vpop.f32.mrf.mxu0
      %v434 = vadd.f32 0.0, %v433
      %435 = vmatmul.f32.gmra.mxu0 %v308
      %v436 = vpop.f32.mrf.mxu0
      %v437 = vadd.f32 0.0, %v436
      %438 = vmatmul.f32.gmra.mxu0 %v311
      %v439 = vpop.f32.mrf.mxu0
      %v440 = vadd.f32 0.0, %v439
      %441 = vmatmul.f32.gmra.mxu0 %v314
      %v442 = vpop.f32.mrf.mxu0
      %v443 = vadd.f32 0.0, %v442
      %444 = vmatmul.f32.gmra.mxu0 %v317
      %v445 = vpop.f32.mrf.mxu0
      %v446 = vadd.f32 0.0, %v445
      %447 = vmatmul.f32.gmra.mxu0 %v320
      %v448 = vpop.f32.mrf.mxu0
      %v449 = vadd.f32 0.0, %v448
      %450 = vmatmul.f32.gmra.mxu0 %v323
      %v451 = vpop.f32.mrf.mxu0
      %v452 = vadd.f32 0.0, %v451
      %453 = vmatmul.f32.gmra.mxu0 %v326
      %v454 = vpop.f32.mrf.mxu0
      %v455 = vadd.f32 0.0, %v454
      %456 = vmatmul.f32.gmra.mxu0 %v329
      %v457 = vpop.f32.mrf.mxu0
      %v458 = vadd.f32 0.0, %v457
      %459 = vmatmul.f32.gmra.mxu0 %v332
      %v460 = vpop.f32.mrf.mxu0
      %v461 = vadd.f32 0.0, %v460
      %462 = vmatmul.f32.gmra.mxu0 %v335
      %v463 = vpop.f32.mrf.mxu0
      %v464 = vadd.f32 0.0, %v463
      %465 = vmatmul.f32.gmra.mxu0 %v338
      %v466 = vpop.f32.mrf.mxu0
      %v467 = vadd.f32 0.0, %v466
      %468 = vmatmul.f32.gmra.mxu0 %v341
      %v469 = vpop.f32.mrf.mxu0
      %v470 = vadd.f32 0.0, %v469
      %471 = vmatmul.f32.gmra.mxu0 %v344
      %v472 = vpop.f32.mrf.mxu0
      %v473 = vadd.f32 0.0, %v472
      %474 = vmatmul.f32.gmra.mxu0 %v347
      %v475 = vpop.f32.mrf.mxu0
      %v476 = vadd.f32 0.0, %v475
      %477 = vmatmul.f32.gmra.mxu0 %v350
      %v478 = vpop.f32.mrf.mxu0
      %v479 = vadd.f32 0.0, %v478
      %480 = vmatmul.f32.gmra.mxu0 %v353
      %v481 = vpop.f32.mrf.mxu0
      %v482 = vadd.f32 0.0, %v481
      %483 = vdwg.mxu0
      %v485 = vsel %vm246, %v171, 0
      %v488 = vsel %vm246, %v172, 0
      %v491 = vsel %vm246, %v173, 0
      %v494 = vsel %vm246, %v174, 0
      %v497 = vsel %vm246, %v175, 0
      %v500 = vsel %vm246, %v176, 0
      %v503 = vsel %vm246, %v177, 0
      %v506 = vsel %vm246, %v178, 0
      %v509 = vsel %vm246, %v179, 0
      %v512 = vsel %vm246, %v180, 0
      %v515 = vsel %vm246, %v181, 0
      %v518 = vsel %vm246, %v182, 0
      %v521 = vsel %vm246, %v183, 0
      %v524 = vsel %vm246, %v184, 0
      %v527 = vsel %vm246, %v185, 0
      %v530 = vsel %vm246, %v186, 0
      %v533 = vsel %vm246, %v187, 0
      %v536 = vsel %vm246, %v188, 0
      %v539 = vsel %vm246, %v189, 0
      %v542 = vsel %vm246, %v190, 0
      %v545 = vsel %vm246, %v191, 0
      %v548 = vsel %vm246, %v192, 0
      %v551 = vsel %vm246, %v193, 0
      %v554 = vsel %vm246, %v194, 0
      %v557 = vsel %vm246, %v195, 0
      %v560 = vsel %vm246, %v196, 0
      %v563 = vsel %vm246, %v197, 0
      %v566 = vsel %vm246, %v198, 0
      %v569 = vsel %vm246, %v199, 0
      %v572 = vsel %vm246, %v200, 0
      %v575 = vsel %vm246, %v201, 0
      %v578 = vsel %vm246, %v202, 0
      %v581 = vsel %vm246, %v203, 0
      %v584 = vsel %vm246, %v204, 0
      %v587 = vsel %vm246, %v205, 0
      %v590 = vsel %vm246, %v206, 0
      %v593 = vsel %vm355, %v207, 0
      %595 = vmatpush.msra.mxu0 0.0
      %596 = vmatpush.msra.mxu0 0.0
      %597 = vmatpush.msra.mxu0 0.0
      %598 = vmatpush.msra.mxu0 0.0
      %599 = vmatpush.msra.mxu0 0.0
      %600 = vmatpush.msra.mxu0 0.0
      %601 = vmatpush.msra.mxu0 0.0
      %602 = vmatpush.msra.mxu0 0.0
      %603 = vmatpush.msra.mxu0 0.0
      %604 = vmatpush.msra.mxu0 0.0
      %605 = vmatpush.msra.mxu0 0.0
      %606 = vmatpush.msra.mxu0 0.0
      %607 = vmatpush.msra.mxu0 0.0
      %608 = vmatpush.msra.mxu0 0.0
      %609 = vmatpush.msra.mxu0 0.0
      %610 = vmatpush.msra.mxu0 %v593
      %611 = vmatmul.f32.gmra.mxu0 %v485
      %v612 = vpop.f32.mrf.mxu0
      %v613 = vadd.f32 %v377, %v612
      %614 = vmatmul.f32.gmra.mxu0 %v488
      %v615 = vpop.f32.mrf.mxu0
      %v616 = vadd.f32 %v380, %v615
      %617 = vmatmul.f32.gmra.mxu0 %v491
      %v618 = vpop.f32.mrf.mxu0
      %v619 = vadd.f32 %v383, %v618
      %620 = vmatmul.f32.gmra.mxu0 %v494
      %v621 = vpop.f32.mrf.mxu0
      %v622 = vadd.f32 %v386, %v621
      %623 = vmatmul.f32.gmra.mxu0 %v497
      %v624 = vpop.f32.mrf.mxu0
      %v625 = vadd.f32 %v389, %v624
      %626 = vmatmul.f32.gmra.mxu0 %v500
      %v627 = vpop.f32.mrf.mxu0
      %v628 = vadd.f32 %v392, %v627
      %629 = vmatmul.f32.gmra.mxu0 %v503
      %v630 = vpop.f32.mrf.mxu0
      %v631 = vadd.f32 %v395, %v630
      %632 = vmatmul.f32.gmra.mxu0 %v506
      %v633 = vpop.f32.mrf.mxu0
      %v634 = vadd.f32 %v398, %v633
      %635 = vmatmul.f32.gmra.mxu0 %v509
      %v636 = vpop.f32.mrf.mxu0
      %v637 = vadd.f32 %v401, %v636
      %638 = vmatmul.f32.gmra.mxu0 %v512
      %v639 = vpop.f32.mrf.mxu0
      %v640 = vadd.f32 %v404, %v639
      %641 = vmatmul.f32.gmra.mxu0 %v515
      %v642 = vpop.f32.mrf.mxu0
      %v643 = vadd.f32 %v407, %v642
      %644 = vmatmul.f32.gmra.mxu0 %v518
      %v645 = vpop.f32.mrf.mxu0
      %v646 = vadd.f32 %v410, %v645
      %647 = vmatmul.f32.gmra.mxu0 %v521
      %v648 = vpop.f32.mrf.mxu0
      %v649 = vadd.f32 %v413, %v648
      %650 = vmatmul.f32.gmra.mxu0 %v524
      %v651 = vpop.f32.mrf.mxu0
      %v652 = vadd.f32 %v416, %v651
      %653 = vmatmul.f32.gmra.mxu0 %v527
      %v654 = vpop.f32.mrf.mxu0
      %v655 = vadd.f32 %v419, %v654
      %656 = vmatmul.f32.gmra.mxu0 %v530
      %v657 = vpop.f32.mrf.mxu0
      %v658 = vadd.f32 %v422, %v657
      %659 = vmatmul.f32.gmra.mxu0 %v533
      %v660 = vpop.f32.mrf.mxu0
      %v661 = vadd.f32 %v425, %v660
      %662 = vmatmul.f32.gmra.mxu0 %v536
      %v663 = vpop.f32.mrf.mxu0
      %v664 = vadd.f32 %v428, %v663
      %665 = vmatmul.f32.gmra.mxu0 %v539
      %v666 = vpop.f32.mrf.mxu0
      %v667 = vadd.f32 %v431, %v666
      %668 = vmatmul.f32.gmra.mxu0 %v542
      %v669 = vpop.f32.mrf.mxu0
      %v670 = vadd.f32 %v434, %v669
      %671 = vmatmul.f32.gmra.mxu0 %v545
      %v672 = vpop.f32.mrf.mxu0
      %v673 = vadd.f32 %v437, %v672
      %674 = vmatmul.f32.gmra.mxu0 %v548
      %v675 = vpop.f32.mrf.mxu0
      %v676 = vadd.f32 %v440, %v675
      %677 = vmatmul.f32.gmra.mxu0 %v551
      %v678 = vpop.f32.mrf.mxu0
      %v679 = vadd.f32 %v443, %v678
      %680 = vmatmul.f32.gmra.mxu0 %v554
      %v681 = vpop.f32.mrf.mxu0
      %v682 = vadd.f32 %v446, %v681
      %683 = vmatmul.f32.gmra.mxu0 %v557
      %v684 = vpop.f32.mrf.mxu0
      %v685 = vadd.f32 %v449, %v684
      %686 = vmatmul.f32.gmra.mxu0 %v560
      %v687 = vpop.f32.mrf.mxu0
      %v688 = vadd.f32 %v452, %v687
      %689 = vmatmul.f32.gmra.mxu0 %v563
      %v690 = vpop.f32.mrf.mxu0
      %v691 = vadd.f32 %v455, %v690
      %692 = vmatmul.f32.gmra.mxu0 %v566
      %v693 = vpop.f32.mrf.mxu0
      %v694 = vadd.f32 %v458, %v693
      %695 = vmatmul.f32.gmra.mxu0 %v569
      %v696 = vpop.f32.mrf.mxu0
      %v697 = vadd.f32 %v461, %v696
      %698 = vmatmul.f32.gmra.mxu0 %v572
      %v699 = vpop.f32.mrf.mxu0
      %v700 = vadd.f32 %v464, %v699
      %701 = vmatmul.f32.gmra.mxu0 %v575
      %v702 = vpop.f32.mrf.mxu0
      %v703 = vadd.f32 %v467, %v702
      %704 = vmatmul.f32.gmra.mxu0 %v578
      %v705 = vpop.f32.mrf.mxu0
      %v706 = vadd.f32 %v470, %v705
      %707 = vmatmul.f32.gmra.mxu0 %v581
      %v708 = vpop.f32.mrf.mxu0
      %v709 = vadd.f32 %v473, %v708
      %710 = vmatmul.f32.gmra.mxu0 %v584
      %v711 = vpop.f32.mrf.mxu0
      %v712 = vadd.f32 %v476, %v711
      %713 = vmatmul.f32.gmra.mxu0 %v587
      %v714 = vpop.f32.mrf.mxu0
      %v715 = vadd.f32 %v479, %v714
      %716 = vmatmul.f32.gmra.mxu0 %v590
      %v717 = vpop.f32.mrf.mxu0
      %v718 = vadd.f32 %v482, %v717
      %719 = vdwg.mxu0
      %v720 = vld [vmem:[%s165 + $0x2] sm:$0xff]
      %v721 = vld [vmem:[%s165 + $0xa] sm:$0xff]
      %v722 = vld [vmem:[%s165 + $0x12] sm:$0xff]
      %v723 = vld [vmem:[%s165 + $0x1a] sm:$0xff]
      %v724 = vld [vmem:[%s165 + $0x22] sm:$0xff]
      %v725 = vld [vmem:[%s165 + $0x2a] sm:$0xff]
      %v726 = vld [vmem:[%s165 + $0x32] sm:$0xff]
      %v727 = vld [vmem:[%s165 + $0x3a] sm:$0xff]
      %v728 = vld [vmem:[%s165 + $0x42] sm:$0xff]
      %v729 = vld [vmem:[%s165 + $0x4a] sm:$0xff]
      %v730 = vld [vmem:[%s165 + $0x52] sm:$0xff]
      %v731 = vld [vmem:[%s165 + $0x5a] sm:$0xff]
      %v732 = vld [vmem:[%s165 + $0x62] sm:$0xff]
      %v733 = vld [vmem:[%s165 + $0x6a] sm:$0xff]
      %v734 = vld [vmem:[%s165 + $0x72] sm:$0xff]
      %v735 = vld [vmem:[%s165 + $0x7a] sm:$0xff]
      %v736 = vld [vmem:[%s165 + $0x82] sm:$0xff]
      %v737 = vld [vmem:[%s165 + $0x8a] sm:$0xff]
      %v738 = vld [vmem:[%s165 + $0x92] sm:$0xff]
      %v739 = vld [vmem:[%s165 + $0x9a] sm:$0xff]
      %v740 = vld [vmem:[%s165 + $0xa2] sm:$0xff]
      %v741 = vld [vmem:[%s165 + $0xaa] sm:$0xff]
      %v742 = vld [vmem:[%s165 + $0xb2] sm:$0xff]
      %v743 = vld [vmem:[%s165 + $0xba] sm:$0xff]
      %v744 = vld [vmem:[%s165 + $0xc2] sm:$0xff]
      %v745 = vld [vmem:[%s165 + $0xca] sm:$0xff]
      %v746 = vld [vmem:[%s165 + $0xd2] sm:$0xff]
      %v747 = vld [vmem:[%s165 + $0xda] sm:$0xff]
      %v748 = vld [vmem:[%s165 + $0xe2] sm:$0xff]
      %v749 = vld [vmem:[%s165 + $0xea] sm:$0xff]
      %v750 = vld [vmem:[%s165 + $0xf2] sm:$0xff]
      %v751 = vld [vmem:[%s165 + $0xfa] sm:$0xff]
      %v752 = vld [vmem:[%s165 + $0x102] sm:$0xff]
      %v753 = vld [vmem:[%s165 + $0x10a] sm:$0xff]
      %v754 = vld [vmem:[%s165 + $0x112] sm:$0xff]
      %v755 = vld [vmem:[%s165 + $0x11a] sm:$0xff]
      %s756 = scalar_lea.vmem %s1, 8
      %v757 = vld [vmem:[%s756] sm:$0xf]
      %v759 = vsel %vm246, %v720, 0
      %v762 = vsel %vm246, %v721, 0
      %v765 = vsel %vm246, %v722, 0
      %v768 = vsel %vm246, %v723, 0
      %v771 = vsel %vm246, %v724, 0
      %v774 = vsel %vm246, %v725, 0
      %v777 = vsel %vm246, %v726, 0
      %v780 = vsel %vm246, %v727, 0
      %v783 = vsel %vm246, %v728, 0
      %v786 = vsel %vm246, %v729, 0
      %v789 = vsel %vm246, %v730, 0
      %v792 = vsel %vm246, %v731, 0
      %v795 = vsel %vm246, %v732, 0
      %v798 = vsel %vm246, %v733, 0
      %v801 = vsel %vm246, %v734, 0
      %v804 = vsel %vm246, %v735, 0
      %v807 = vsel %vm246, %v736, 0
      %v810 = vsel %vm246, %v737, 0
      %v813 = vsel %vm246, %v738, 0
      %v816 = vsel %vm246, %v739, 0
      %v819 = vsel %vm246, %v740, 0
      %v822 = vsel %vm246, %v741, 0
      %v825 = vsel %vm246, %v742, 0
      %v828 = vsel %vm246, %v743, 0
      %v831 = vsel %vm246, %v744, 0
      %v834 = vsel %vm246, %v745, 0
      %v837 = vsel %vm246, %v746, 0
      %v840 = vsel %vm246, %v747, 0
      %v843 = vsel %vm246, %v748, 0
      %v846 = vsel %vm246, %v749, 0
      %v849 = vsel %vm246, %v750, 0
      %v852 = vsel %vm246, %v751, 0
      %v855 = vsel %vm246, %v752, 0
      %v858 = vsel %vm246, %v753, 0
      %v861 = vsel %vm246, %v754, 0
      %v864 = vsel %vm246, %v755, 0
      %v867 = vsel %vm355, %v757, 0
      %869 = vmatpush.msra.mxu0 0.0
      %870 = vmatpush.msra.mxu0 0.0
      %871 = vmatpush.msra.mxu0 0.0
      %872 = vmatpush.msra.mxu0 0.0
      %873 = vmatpush.msra.mxu0 0.0
      %874 = vmatpush.msra.mxu0 0.0
      %875 = vmatpush.msra.mxu0 0.0
      %876 = vmatpush.msra.mxu0 0.0
      %877 = vmatpush.msra.mxu0 0.0
      %878 = vmatpush.msra.mxu0 0.0
      %879 = vmatpush.msra.mxu0 0.0
      %880 = vmatpush.msra.mxu0 0.0
      %881 = vmatpush.msra.mxu0 0.0
      %882 = vmatpush.msra.mxu0 0.0
      %883 = vmatpush.msra.mxu0 0.0
      %884 = vmatpush.msra.mxu0 %v867
      %885 = vmatmul.f32.gmra.mxu0 %v759
      %v886 = vpop.f32.mrf.mxu0
      %v887 = vadd.f32 0.0, %v886
      %888 = vmatmul.f32.gmra.mxu0 %v762
      %v889 = vpop.f32.mrf.mxu0
      %v890 = vadd.f32 0.0, %v889
      %891 = vmatmul.f32.gmra.mxu0 %v765
      %v892 = vpop.f32.mrf.mxu0
      %v893 = vadd.f32 0.0, %v892
      %894 = vmatmul.f32.gmra.mxu0 %v768
      %v895 = vpop.f32.mrf.mxu0
      %v896 = vadd.f32 0.0, %v895
      %897 = vmatmul.f32.gmra.mxu0 %v771
      %v898 = vpop.f32.mrf.mxu0
      %v899 = vadd.f32 0.0, %v898
      %900 = vmatmul.f32.gmra.mxu0 %v774
      %v901 = vpop.f32.mrf.mxu0
      %v902 = vadd.f32 0.0, %v901
      %903 = vmatmul.f32.gmra.mxu0 %v777
      %v904 = vpop.f32.mrf.mxu0
      %v905 = vadd.f32 0.0, %v904
      %906 = vmatmul.f32.gmra.mxu0 %v780
      %v907 = vpop.f32.mrf.mxu0
      %v908 = vadd.f32 0.0, %v907
      %909 = vmatmul.f32.gmra.mxu0 %v783
      %v910 = vpop.f32.mrf.mxu0
      %v911 = vadd.f32 0.0, %v910
      %912 = vmatmul.f32.gmra.mxu0 %v786
      %v913 = vpop.f32.mrf.mxu0
      %v914 = vadd.f32 0.0, %v913
      %915 = vmatmul.f32.gmra.mxu0 %v789
      %v916 = vpop.f32.mrf.mxu0
      %v917 = vadd.f32 0.0, %v916
      %918 = vmatmul.f32.gmra.mxu0 %v792
      %v919 = vpop.f32.mrf.mxu0
      %v920 = vadd.f32 0.0, %v919
      %921 = vmatmul.f32.gmra.mxu0 %v795
      %v922 = vpop.f32.mrf.mxu0
      %v923 = vadd.f32 0.0, %v922
      %924 = vmatmul.f32.gmra.mxu0 %v798
      %v925 = vpop.f32.mrf.mxu0
      %v926 = vadd.f32 0.0, %v925
      %927 = vmatmul.f32.gmra.mxu0 %v801
      %v928 = vpop.f32.mrf.mxu0
      %v929 = vadd.f32 0.0, %v928
      %930 = vmatmul.f32.gmra.mxu0 %v804
      %v931 = vpop.f32.mrf.mxu0
      %v932 = vadd.f32 0.0, %v931
      %933 = vmatmul.f32.gmra.mxu0 %v807
      %v934 = vpop.f32.mrf.mxu0
      %v935 = vadd.f32 0.0, %v934
      %936 = vmatmul.f32.gmra.mxu0 %v810
      %v937 = vpop.f32.mrf.mxu0
      %v938 = vadd.f32 0.0, %v937
      %939 = vmatmul.f32.gmra.mxu0 %v813
      %v940 = vpop.f32.mrf.mxu0
      %v941 = vadd.f32 0.0, %v940
      %942 = vmatmul.f32.gmra.mxu0 %v816
      %v943 = vpop.f32.mrf.mxu0
      %v944 = vadd.f32 0.0, %v943
      %945 = vmatmul.f32.gmra.mxu0 %v819
      %v946 = vpop.f32.mrf.mxu0
      %v947 = vadd.f32 0.0, %v946
      %948 = vmatmul.f32.gmra.mxu0 %v822
      %v949 = vpop.f32.mrf.mxu0
      %v950 = vadd.f32 0.0, %v949
      %951 = vmatmul.f32.gmra.mxu0 %v825
      %v952 = vpop.f32.mrf.mxu0
      %v953 = vadd.f32 0.0, %v952
      %954 = vmatmul.f32.gmra.mxu0 %v828
      %v955 = vpop.f32.mrf.mxu0
      %v956 = vadd.f32 0.0, %v955
      %957 = vmatmul.f32.gmra.mxu0 %v831
      %v958 = vpop.f32.mrf.mxu0
      %v959 = vadd.f32 0.0, %v958
      %960 = vmatmul.f32.gmra.mxu0 %v834
      %v961 = vpop.f32.mrf.mxu0
      %v962 = vadd.f32 0.0, %v961
      %963 = vmatmul.f32.gmra.mxu0 %v837
      %v964 = vpop.f32.mrf.mxu0
      %v965 = vadd.f32 0.0, %v964
      %966 = vmatmul.f32.gmra.mxu0 %v840
      %v967 = vpop.f32.mrf.mxu0
      %v968 = vadd.f32 0.0, %v967
      %969 = vmatmul.f32.gmra.mxu0 %v843
      %v970 = vpop.f32.mrf.mxu0
      %v971 = vadd.f32 0.0, %v970
      %972 = vmatmul.f32.gmra.mxu0 %v846
      %v973 = vpop.f32.mrf.mxu0
      %v974 = vadd.f32 0.0, %v973
      %975 = vmatmul.f32.gmra.mxu0 %v849
      %v976 = vpop.f32.mrf.mxu0
      %v977 = vadd.f32 0.0, %v976
      %978 = vmatmul.f32.gmra.mxu0 %v852
      %v979 = vpop.f32.mrf.mxu0
      %v980 = vadd.f32 0.0, %v979
      %981 = vmatmul.f32.gmra.mxu0 %v855
      %v982 = vpop.f32.mrf.mxu0
      %v983 = vadd.f32 0.0, %v982
      %984 = vmatmul.f32.gmra.mxu0 %v858
      %v985 = vpop.f32.mrf.mxu0
      %v986 = vadd.f32 0.0, %v985
      %987 = vmatmul.f32.gmra.mxu0 %v861
      %v988 = vpop.f32.mrf.mxu0
      %v989 = vadd.f32 0.0, %v988
      %990 = vmatmul.f32.gmra.mxu0 %v864
      %v991 = vpop.f32.mrf.mxu0
      %v992 = vadd.f32 0.0, %v991
      %993 = vdwg.mxu0
      %v994 = vadd.f32 %v613, %v887
      %v995 = vadd.f32 %v616, %v890
      %v996 = vadd.f32 %v619, %v893
      %v997 = vadd.f32 %v622, %v896
      %v998 = vadd.f32 %v625, %v899
      %v999 = vadd.f32 %v628, %v902
      %v1000 = vadd.f32 %v631, %v905
      %v1001 = vadd.f32 %v634, %v908
      %v1002 = vadd.f32 %v637, %v911
      %v1003 = vadd.f32 %v640, %v914
      %v1004 = vadd.f32 %v643, %v917
      %v1005 = vadd.f32 %v646, %v920
      %v1006 = vadd.f32 %v649, %v923
      %v1007 = vadd.f32 %v652, %v926
      %v1008 = vadd.f32 %v655, %v929
      %v1009 = vadd.f32 %v658, %v932
      %v1010 = vadd.f32 %v661, %v935
      %v1011 = vadd.f32 %v664, %v938
      %v1012 = vadd.f32 %v667, %v941
      %v1013 = vadd.f32 %v670, %v944
      %v1014 = vadd.f32 %v673, %v947
      %v1015 = vadd.f32 %v676, %v950
      %v1016 = vadd.f32 %v679, %v953
      %v1017 = vadd.f32 %v682, %v956
      %v1018 = vadd.f32 %v685, %v959
      %v1019 = vadd.f32 %v688, %v962
      %v1020 = vadd.f32 %v691, %v965
      %v1021 = vadd.f32 %v694, %v968
      %v1022 = vadd.f32 %v697, %v971
      %v1023 = vadd.f32 %v700, %v974
      %v1024 = vadd.f32 %v703, %v977
      %v1025 = vadd.f32 %v706, %v980
      %v1026 = vadd.f32 %v709, %v983
      %v1027 = vadd.f32 %v712, %v986
      %v1028 = vadd.f32 %v715, %v989
      %v1029 = vadd.f32 %v718, %v992
      %v1030 = vld [vmem:[%s165 + $0x12] sm:$0xff]
      %v1031 = vld [vmem:[%s165 + $0x1a] sm:$0xff]
      %v1032 = vld [vmem:[%s165 + $0x22] sm:$0xff]
      %v1033 = vld [vmem:[%s165 + $0x2a] sm:$0xff]
      %v1034 = vld [vmem:[%s165 + $0x32] sm:$0xff]
      %v1035 = vld [vmem:[%s165 + $0x3a] sm:$0xff]
      %v1036 = vld [vmem:[%s165 + $0x42] sm:$0xff]
      %v1037 = vld [vmem:[%s165 + $0x4a] sm:$0xff]
      %v1038 = vld [vmem:[%s165 + $0x52] sm:$0xff]
      %v1039 = vld [vmem:[%s165 + $0x5a] sm:$0xff]
      %v1040 = vld [vmem:[%s165 + $0x62] sm:$0xff]
      %v1041 = vld [vmem:[%s165 + $0x6a] sm:$0xff]
      %v1042 = vld [vmem:[%s165 + $0x72] sm:$0xff]
      %v1043 = vld [vmem:[%s165 + $0x7a] sm:$0xff]
      %v1044 = vld [vmem:[%s165 + $0x82] sm:$0xff]
      %v1045 = vld [vmem:[%s165 + $0x8a] sm:$0xff]
      %v1046 = vld [vmem:[%s165 + $0x92] sm:$0xff]
      %v1047 = vld [vmem:[%s165 + $0x9a] sm:$0xff]
      %v1048 = vld [vmem:[%s165 + $0xa2] sm:$0xff]
      %v1049 = vld [vmem:[%s165 + $0xaa] sm:$0xff]
      %v1050 = vld [vmem:[%s165 + $0xb2] sm:$0xff]
      %v1051 = vld [vmem:[%s165 + $0xba] sm:$0xff]
      %v1052 = vld [vmem:[%s165 + $0xc2] sm:$0xff]
      %v1053 = vld [vmem:[%s165 + $0xca] sm:$0xff]
      %v1054 = vld [vmem:[%s165 + $0xd2] sm:$0xff]
      %v1055 = vld [vmem:[%s165 + $0xda] sm:$0xff]
      %v1056 = vld [vmem:[%s165 + $0xe2] sm:$0xff]
      %v1057 = vld [vmem:[%s165 + $0xea] sm:$0xff]
      %v1058 = vld [vmem:[%s165 + $0xf2] sm:$0xff]
      %v1059 = vld [vmem:[%s165 + $0xfa] sm:$0xff]
      %v1060 = vld [vmem:[%s165 + $0x102] sm:$0xff]
      %v1061 = vld [vmem:[%s165 + $0x10a] sm:$0xff]
      %v1062 = vld [vmem:[%s165 + $0x112] sm:$0xff]
      %v1063 = vld [vmem:[%s165 + $0x11a] sm:$0xff]
      %v1064 = vld [vmem:[%s165 + $0x122] sm:$0xff]
      %v1065 = vld [vmem:[%s165 + $0x12a] sm:$0xff]
      %s1066 = scalar_lea.vmem %s1, 12
      %v1067 = vld [vmem:[%s1066] sm:$0xf]
      %v1069 = vsel %vm246, %v1030, 0
      %v1072 = vsel %vm246, %v1031, 0
      %v1075 = vsel %vm246, %v1032, 0
      %v1078 = vsel %vm246, %v1033, 0
      %v1081 = vsel %vm246, %v1034, 0
      %v1084 = vsel %vm246, %v1035, 0
      %v1087 = vsel %vm246, %v1036, 0
      %v1090 = vsel %vm246, %v1037, 0
      %v1093 = vsel %vm246, %v1038, 0
      %v1096 = vsel %vm246, %v1039, 0
      %v1099 = vsel %vm246, %v1040, 0
      %v1102 = vsel %vm246, %v1041, 0
      %v1105 = vsel %vm246, %v1042, 0
      %v1108 = vsel %vm246, %v1043, 0
      %v1111 = vsel %vm246, %v1044, 0
      %v1114 = vsel %vm246, %v1045, 0
      %v1117 = vsel %vm246, %v1046, 0
      %v1120 = vsel %vm246, %v1047, 0
      %v1123 = vsel %vm246, %v1048, 0
      %v1126 = vsel %vm246, %v1049, 0
      %v1129 = vsel %vm246, %v1050, 0
      %v1132 = vsel %vm246, %v1051, 0
      %v1135 = vsel %vm246, %v1052, 0
      %v1138 = vsel %vm246, %v1053, 0
      %v1141 = vsel %vm246, %v1054, 0
      %v1144 = vsel %vm246, %v1055, 0
      %v1147 = vsel %vm246, %v1056, 0
      %v1150 = vsel %vm246, %v1057, 0
      %v1153 = vsel %vm246, %v1058, 0
      %v1156 = vsel %vm246, %v1059, 0
      %v1159 = vsel %vm246, %v1060, 0
      %v1162 = vsel %vm246, %v1061, 0
      %v1165 = vsel %vm246, %v1062, 0
      %v1168 = vsel %vm246, %v1063, 0
      %v1171 = vsel %vm246, %v1064, 0
      %v1174 = vsel %vm246, %v1065, 0
      %v1177 = vsel %vm355, %v1067, 0
      %1179 = vmatpush.msra.mxu0 0.0
      %1180 = vmatpush.msra.mxu0 0.0
      %1181 = vmatpush.msra.mxu0 0.0
      %1182 = vmatpush.msra.mxu0 0.0
      %1183 = vmatpush.msra.mxu0 0.0
      %1184 = vmatpush.msra.mxu0 0.0
      %1185 = vmatpush.msra.mxu0 0.0
      %1186 = vmatpush.msra.mxu0 0.0
      %1187 = vmatpush.msra.mxu0 0.0
      %1188 = vmatpush.msra.mxu0 0.0
      %1189 = vmatpush.msra.mxu0 0.0
      %1190 = vmatpush.msra.mxu0 0.0
      %1191 = vmatpush.msra.mxu0 0.0
      %1192 = vmatpush.msra.mxu0 0.0
      %1193 = vmatpush.msra.mxu0 0.0
      %1194 = vmatpush.msra.mxu0 %v1177
      %1195 = vmatmul.f32.gmra.mxu0 %v1069
      %v1196 = vpop.f32.mrf.mxu0
      %v1197 = vadd.f32 0.0, %v1196
      %1198 = vmatmul.f32.gmra.mxu0 %v1072
      %v1199 = vpop.f32.mrf.mxu0
      %v1200 = vadd.f32 0.0, %v1199
      %1201 = vmatmul.f32.gmra.mxu0 %v1075
      %v1202 = vpop.f32.mrf.mxu0
      %v1203 = vadd.f32 0.0, %v1202
      %1204 = vmatmul.f32.gmra.mxu0 %v1078
      %v1205 = vpop.f32.mrf.mxu0
      %v1206 = vadd.f32 0.0, %v1205
      %1207 = vmatmul.f32.gmra.mxu0 %v1081
      %v1208 = vpop.f32.mrf.mxu0
      %v1209 = vadd.f32 0.0, %v1208
      %1210 = vmatmul.f32.gmra.mxu0 %v1084
      %v1211 = vpop.f32.mrf.mxu0
      %v1212 = vadd.f32 0.0, %v1211
      %1213 = vmatmul.f32.gmra.mxu0 %v1087
      %v1214 = vpop.f32.mrf.mxu0
      %v1215 = vadd.f32 0.0, %v1214
      %1216 = vmatmul.f32.gmra.mxu0 %v1090
      %v1217 = vpop.f32.mrf.mxu0
      %v1218 = vadd.f32 0.0, %v1217
      %1219 = vmatmul.f32.gmra.mxu0 %v1093
      %v1220 = vpop.f32.mrf.mxu0
      %v1221 = vadd.f32 0.0, %v1220
      %1222 = vmatmul.f32.gmra.mxu0 %v1096
      %v1223 = vpop.f32.mrf.mxu0
      %v1224 = vadd.f32 0.0, %v1223
      %1225 = vmatmul.f32.gmra.mxu0 %v1099
      %v1226 = vpop.f32.mrf.mxu0
      %v1227 = vadd.f32 0.0, %v1226
      %1228 = vmatmul.f32.gmra.mxu0 %v1102
      %v1229 = vpop.f32.mrf.mxu0
      %v1230 = vadd.f32 0.0, %v1229
      %1231 = vmatmul.f32.gmra.mxu0 %v1105
      %v1232 = vpop.f32.mrf.mxu0
      %v1233 = vadd.f32 0.0, %v1232
      %1234 = vmatmul.f32.gmra.mxu0 %v1108
      %v1235 = vpop.f32.mrf.mxu0
      %v1236 = vadd.f32 0.0, %v1235
      %1237 = vmatmul.f32.gmra.mxu0 %v1111
      %v1238 = vpop.f32.mrf.mxu0
      %v1239 = vadd.f32 0.0, %v1238
      %1240 = vmatmul.f32.gmra.mxu0 %v1114
      %v1241 = vpop.f32.mrf.mxu0
      %v1242 = vadd.f32 0.0, %v1241
      %1243 = vmatmul.f32.gmra.mxu0 %v1117
      %v1244 = vpop.f32.mrf.mxu0
      %v1245 = vadd.f32 0.0, %v1244
      %1246 = vmatmul.f32.gmra.mxu0 %v1120
      %v1247 = vpop.f32.mrf.mxu0
      %v1248 = vadd.f32 0.0, %v1247
      %1249 = vmatmul.f32.gmra.mxu0 %v1123
      %v1250 = vpop.f32.mrf.mxu0
      %v1251 = vadd.f32 0.0, %v1250
      %1252 = vmatmul.f32.gmra.mxu0 %v1126
      %v1253 = vpop.f32.mrf.mxu0
      %v1254 = vadd.f32 0.0, %v1253
      %1255 = vmatmul.f32.gmra.mxu0 %v1129
      %v1256 = vpop.f32.mrf.mxu0
      %v1257 = vadd.f32 0.0, %v1256
      %1258 = vmatmul.f32.gmra.mxu0 %v1132
      %v1259 = vpop.f32.mrf.mxu0
      %v1260 = vadd.f32 0.0, %v1259
      %1261 = vmatmul.f32.gmra.mxu0 %v1135
      %v1262 = vpop.f32.mrf.mxu0
      %v1263 = vadd.f32 0.0, %v1262
      %1264 = vmatmul.f32.gmra.mxu0 %v1138
      %v1265 = vpop.f32.mrf.mxu0
      %v1266 = vadd.f32 0.0, %v1265
      %1267 = vmatmul.f32.gmra.mxu0 %v1141
      %v1268 = vpop.f32.mrf.mxu0
      %v1269 = vadd.f32 0.0, %v1268
      %1270 = vmatmul.f32.gmra.mxu0 %v1144
      %v1271 = vpop.f32.mrf.mxu0
      %v1272 = vadd.f32 0.0, %v1271
      %1273 = vmatmul.f32.gmra.mxu0 %v1147
      %v1274 = vpop.f32.mrf.mxu0
      %v1275 = vadd.f32 0.0, %v1274
      %1276 = vmatmul.f32.gmra.mxu0 %v1150
      %v1277 = vpop.f32.mrf.mxu0
      %v1278 = vadd.f32 0.0, %v1277
      %1279 = vmatmul.f32.gmra.mxu0 %v1153
      %v1280 = vpop.f32.mrf.mxu0
      %v1281 = vadd.f32 0.0, %v1280
      %1282 = vmatmul.f32.gmra.mxu0 %v1156
      %v1283 = vpop.f32.mrf.mxu0
      %v1284 = vadd.f32 0.0, %v1283
      %1285 = vmatmul.f32.gmra.mxu0 %v1159
      %v1286 = vpop.f32.mrf.mxu0
      %v1287 = vadd.f32 0.0, %v1286
      %1288 = vmatmul.f32.gmra.mxu0 %v1162
      %v1289 = vpop.f32.mrf.mxu0
      %v1290 = vadd.f32 0.0, %v1289
      %1291 = vmatmul.f32.gmra.mxu0 %v1165
      %v1292 = vpop.f32.mrf.mxu0
      %v1293 = vadd.f32 0.0, %v1292
      %1294 = vmatmul.f32.gmra.mxu0 %v1168
      %v1295 = vpop.f32.mrf.mxu0
      %v1296 = vadd.f32 0.0, %v1295
      %1297 = vmatmul.f32.gmra.mxu0 %v1171
      %v1298 = vpop.f32.mrf.mxu0
      %v1299 = vadd.f32 0.0, %v1298
      %1300 = vmatmul.f32.gmra.mxu0 %v1174
      %v1301 = vpop.f32.mrf.mxu0
      %v1302 = vadd.f32 0.0, %v1301
      %1303 = vdwg.mxu0
      %v1304 = vadd.f32 %v994, %v1197
      %v1305 = vadd.f32 %v995, %v1200
      %v1306 = vadd.f32 %v996, %v1203
      %v1307 = vadd.f32 %v997, %v1206
      %v1308 = vadd.f32 %v998, %v1209
      %v1309 = vadd.f32 %v999, %v1212
      %v1310 = vadd.f32 %v1000, %v1215
      %v1311 = vadd.f32 %v1001, %v1218
      %v1312 = vadd.f32 %v1002, %v1221
      %v1313 = vadd.f32 %v1003, %v1224
      %v1314 = vadd.f32 %v1004, %v1227
      %v1315 = vadd.f32 %v1005, %v1230
      %v1316 = vadd.f32 %v1006, %v1233
      %v1317 = vadd.f32 %v1007, %v1236
      %v1318 = vadd.f32 %v1008, %v1239
      %v1319 = vadd.f32 %v1009, %v1242
      %v1320 = vadd.f32 %v1010, %v1245
      %v1321 = vadd.f32 %v1011, %v1248
      %v1322 = vadd.f32 %v1012, %v1251
      %v1323 = vadd.f32 %v1013, %v1254
      %v1324 = vadd.f32 %v1014, %v1257
      %v1325 = vadd.f32 %v1015, %v1260
      %v1326 = vadd.f32 %v1016, %v1263
      %v1327 = vadd.f32 %v1017, %v1266
      %v1328 = vadd.f32 %v1018, %v1269
      %v1329 = vadd.f32 %v1019, %v1272
      %v1330 = vadd.f32 %v1020, %v1275
      %v1331 = vadd.f32 %v1021, %v1278
      %v1332 = vadd.f32 %v1022, %v1281
      %v1333 = vadd.f32 %v1023, %v1284
      %v1334 = vadd.f32 %v1024, %v1287
      %v1335 = vadd.f32 %v1025, %v1290
      %v1336 = vadd.f32 %v1026, %v1293
      %v1337 = vadd.f32 %v1027, %v1296
      %v1338 = vadd.f32 %v1028, %v1299
      %v1339 = vadd.f32 %v1029, %v1302
      %v1340 = vld [vmem:[%s165 + $0x13] sm:$0xff]
      %v1341 = vld [vmem:[%s165 + $0x1b] sm:$0xff]
      %v1342 = vld [vmem:[%s165 + $0x23] sm:$0xff]
      %v1343 = vld [vmem:[%s165 + $0x2b] sm:$0xff]
      %v1344 = vld [vmem:[%s165 + $0x33] sm:$0xff]
      %v1345 = vld [vmem:[%s165 + $0x3b] sm:$0xff]
      %v1346 = vld [vmem:[%s165 + $0x43] sm:$0xff]
      %v1347 = vld [vmem:[%s165 + $0x4b] sm:$0xff]
      %v1348 = vld [vmem:[%s165 + $0x53] sm:$0xff]
      %v1349 = vld [vmem:[%s165 + $0x5b] sm:$0xff]
      %v1350 = vld [vmem:[%s165 + $0x63] sm:$0xff]
      %v1351 = vld [vmem:[%s165 + $0x6b] sm:$0xff]
      %v1352 = vld [vmem:[%s165 + $0x73] sm:$0xff]
      %v1353 = vld [vmem:[%s165 + $0x7b] sm:$0xff]
      %v1354 = vld [vmem:[%s165 + $0x83] sm:$0xff]
      %v1355 = vld [vmem:[%s165 + $0x8b] sm:$0xff]
      %v1356 = vld [vmem:[%s165 + $0x93] sm:$0xff]
      %v1357 = vld [vmem:[%s165 + $0x9b] sm:$0xff]
      %v1358 = vld [vmem:[%s165 + $0xa3] sm:$0xff]
      %v1359 = vld [vmem:[%s165 + $0xab] sm:$0xff]
      %v1360 = vld [vmem:[%s165 + $0xb3] sm:$0xff]
      %v1361 = vld [vmem:[%s165 + $0xbb] sm:$0xff]
      %v1362 = vld [vmem:[%s165 + $0xc3] sm:$0xff]
      %v1363 = vld [vmem:[%s165 + $0xcb] sm:$0xff]
      %v1364 = vld [vmem:[%s165 + $0xd3] sm:$0xff]
      %v1365 = vld [vmem:[%s165 + $0xdb] sm:$0xff]
      %v1366 = vld [vmem:[%s165 + $0xe3] sm:$0xff]
      %v1367 = vld [vmem:[%s165 + $0xeb] sm:$0xff]
      %v1368 = vld [vmem:[%s165 + $0xf3] sm:$0xff]
      %v1369 = vld [vmem:[%s165 + $0xfb] sm:$0xff]
      %v1370 = vld [vmem:[%s165 + $0x103] sm:$0xff]
      %v1371 = vld [vmem:[%s165 + $0x10b] sm:$0xff]
      %v1372 = vld [vmem:[%s165 + $0x113] sm:$0xff]
      %v1373 = vld [vmem:[%s165 + $0x11b] sm:$0xff]
      %v1374 = vld [vmem:[%s165 + $0x123] sm:$0xff]
      %v1375 = vld [vmem:[%s165 + $0x12b] sm:$0xff]
      %s1376 = scalar_lea.vmem %s1, 16
      %v1377 = vld [vmem:[%s1376] sm:$0xf]
      %v1379 = vsel %vm246, %v1340, 0
      %v1382 = vsel %vm246, %v1341, 0
      %v1385 = vsel %vm246, %v1342, 0
      %v1388 = vsel %vm246, %v1343, 0
      %v1391 = vsel %vm246, %v1344, 0
      %v1394 = vsel %vm246, %v1345, 0
      %v1397 = vsel %vm246, %v1346, 0
      %v1400 = vsel %vm246, %v1347, 0
      %v1403 = vsel %vm246, %v1348, 0
      %v1406 = vsel %vm246, %v1349, 0
      %v1409 = vsel %vm246, %v1350, 0
      %v1412 = vsel %vm246, %v1351, 0
      %v1415 = vsel %vm246, %v1352, 0
      %v1418 = vsel %vm246, %v1353, 0
      %v1421 = vsel %vm246, %v1354, 0
      %v1424 = vsel %vm246, %v1355, 0
      %v1427 = vsel %vm246, %v1356, 0
      %v1430 = vsel %vm246, %v1357, 0
      %v1433 = vsel %vm246, %v1358, 0
      %v1436 = vsel %vm246, %v1359, 0
      %v1439 = vsel %vm246, %v1360, 0
      %v1442 = vsel %vm246, %v1361, 0
      %v1445 = vsel %vm246, %v1362, 0
      %v1448 = vsel %vm246, %v1363, 0
      %v1451 = vsel %vm246, %v1364, 0
      %v1454 = vsel %vm246, %v1365, 0
      %v1457 = vsel %vm246, %v1366, 0
      %v1460 = vsel %vm246, %v1367, 0
      %v1463 = vsel %vm246, %v1368, 0
      %v1466 = vsel %vm246, %v1369, 0
      %v1469 = vsel %vm246, %v1370, 0
      %v1472 = vsel %vm246, %v1371, 0
      %v1475 = vsel %vm246, %v1372, 0
      %v1478 = vsel %vm246, %v1373, 0
      %v1481 = vsel %vm246, %v1374, 0
      %v1484 = vsel %vm246, %v1375, 0
      %v1487 = vsel %vm355, %v1377, 0
      %1489 = vmatpush.msra.mxu0 0.0
      %1490 = vmatpush.msra.mxu0 0.0
      %1491 = vmatpush.msra.mxu0 0.0
      %1492 = vmatpush.msra.mxu0 0.0
      %1493 = vmatpush.msra.mxu0 0.0
      %1494 = vmatpush.msra.mxu0 0.0
      %1495 = vmatpush.msra.mxu0 0.0
      %1496 = vmatpush.msra.mxu0 0.0
      %1497 = vmatpush.msra.mxu0 0.0
      %1498 = vmatpush.msra.mxu0 0.0
      %1499 = vmatpush.msra.mxu0 0.0
      %1500 = vmatpush.msra.mxu0 0.0
      %1501 = vmatpush.msra.mxu0 0.0
      %1502 = vmatpush.msra.mxu0 0.0
      %1503 = vmatpush.msra.mxu0 0.0
      %1504 = vmatpush.msra.mxu0 %v1487
      %1505 = vmatmul.f32.gmra.mxu0 %v1379
      %v1506 = vpop.f32.mrf.mxu0
      %v1507 = vadd.f32 0.0, %v1506
      %1508 = vmatmul.f32.gmra.mxu0 %v1382
      %v1509 = vpop.f32.mrf.mxu0
      %v1510 = vadd.f32 0.0, %v1509
      %1511 = vmatmul.f32.gmra.mxu0 %v1385
      %v1512 = vpop.f32.mrf.mxu0
      %v1513 = vadd.f32 0.0, %v1512
      %1514 = vmatmul.f32.gmra.mxu0 %v1388
      %v1515 = vpop.f32.mrf.mxu0
      %v1516 = vadd.f32 0.0, %v1515
      %1517 = vmatmul.f32.gmra.mxu0 %v1391
      %v1518 = vpop.f32.mrf.mxu0
      %v1519 = vadd.f32 0.0, %v1518
      %1520 = vmatmul.f32.gmra.mxu0 %v1394
      %v1521 = vpop.f32.mrf.mxu0
      %v1522 = vadd.f32 0.0, %v1521
      %1523 = vmatmul.f32.gmra.mxu0 %v1397
      %v1524 = vpop.f32.mrf.mxu0
      %v1525 = vadd.f32 0.0, %v1524
      %1526 = vmatmul.f32.gmra.mxu0 %v1400
      %v1527 = vpop.f32.mrf.mxu0
      %v1528 = vadd.f32 0.0, %v1527
      %1529 = vmatmul.f32.gmra.mxu0 %v1403
      %v1530 = vpop.f32.mrf.mxu0
      %v1531 = vadd.f32 0.0, %v1530
      %1532 = vmatmul.f32.gmra.mxu0 %v1406
      %v1533 = vpop.f32.mrf.mxu0
      %v1534 = vadd.f32 0.0, %v1533
      %1535 = vmatmul.f32.gmra.mxu0 %v1409
      %v1536 = vpop.f32.mrf.mxu0
      %v1537 = vadd.f32 0.0, %v1536
      %1538 = vmatmul.f32.gmra.mxu0 %v1412
      %v1539 = vpop.f32.mrf.mxu0
      %v1540 = vadd.f32 0.0, %v1539
      %1541 = vmatmul.f32.gmra.mxu0 %v1415
      %v1542 = vpop.f32.mrf.mxu0
      %v1543 = vadd.f32 0.0, %v1542
      %1544 = vmatmul.f32.gmra.mxu0 %v1418
      %v1545 = vpop.f32.mrf.mxu0
      %v1546 = vadd.f32 0.0, %v1545
      %1547 = vmatmul.f32.gmra.mxu0 %v1421
      %v1548 = vpop.f32.mrf.mxu0
      %v1549 = vadd.f32 0.0, %v1548
      %1550 = vmatmul.f32.gmra.mxu0 %v1424
      %v1551 = vpop.f32.mrf.mxu0
      %v1552 = vadd.f32 0.0, %v1551
      %1553 = vmatmul.f32.gmra.mxu0 %v1427
      %v1554 = vpop.f32.mrf.mxu0
      %v1555 = vadd.f32 0.0, %v1554
      %1556 = vmatmul.f32.gmra.mxu0 %v1430
      %v1557 = vpop.f32.mrf.mxu0
      %v1558 = vadd.f32 0.0, %v1557
      %1559 = vmatmul.f32.gmra.mxu0 %v1433
      %v1560 = vpop.f32.mrf.mxu0
      %v1561 = vadd.f32 0.0, %v1560
      %1562 = vmatmul.f32.gmra.mxu0 %v1436
      %v1563 = vpop.f32.mrf.mxu0
      %v1564 = vadd.f32 0.0, %v1563
      %1565 = vmatmul.f32.gmra.mxu0 %v1439
      %v1566 = vpop.f32.mrf.mxu0
      %v1567 = vadd.f32 0.0, %v1566
      %1568 = vmatmul.f32.gmra.mxu0 %v1442
      %v1569 = vpop.f32.mrf.mxu0
      %v1570 = vadd.f32 0.0, %v1569
      %1571 = vmatmul.f32.gmra.mxu0 %v1445
      %v1572 = vpop.f32.mrf.mxu0
      %v1573 = vadd.f32 0.0, %v1572
      %1574 = vmatmul.f32.gmra.mxu0 %v1448
      %v1575 = vpop.f32.mrf.mxu0
      %v1576 = vadd.f32 0.0, %v1575
      %1577 = vmatmul.f32.gmra.mxu0 %v1451
      %v1578 = vpop.f32.mrf.mxu0
      %v1579 = vadd.f32 0.0, %v1578
      %1580 = vmatmul.f32.gmra.mxu0 %v1454
      %v1581 = vpop.f32.mrf.mxu0
      %v1582 = vadd.f32 0.0, %v1581
      %1583 = vmatmul.f32.gmra.mxu0 %v1457
      %v1584 = vpop.f32.mrf.mxu0
      %v1585 = vadd.f32 0.0, %v1584
      %1586 = vmatmul.f32.gmra.mxu0 %v1460
      %v1587 = vpop.f32.mrf.mxu0
      %v1588 = vadd.f32 0.0, %v1587
      %1589 = vmatmul.f32.gmra.mxu0 %v1463
      %v1590 = vpop.f32.mrf.mxu0
      %v1591 = vadd.f32 0.0, %v1590
      %1592 = vmatmul.f32.gmra.mxu0 %v1466
      %v1593 = vpop.f32.mrf.mxu0
      %v1594 = vadd.f32 0.0, %v1593
      %1595 = vmatmul.f32.gmra.mxu0 %v1469
      %v1596 = vpop.f32.mrf.mxu0
      %v1597 = vadd.f32 0.0, %v1596
      %1598 = vmatmul.f32.gmra.mxu0 %v1472
      %v1599 = vpop.f32.mrf.mxu0
      %v1600 = vadd.f32 0.0, %v1599
      %1601 = vmatmul.f32.gmra.mxu0 %v1475
      %v1602 = vpop.f32.mrf.mxu0
      %v1603 = vadd.f32 0.0, %v1602
      %1604 = vmatmul.f32.gmra.mxu0 %v1478
      %v1605 = vpop.f32.mrf.mxu0
      %v1606 = vadd.f32 0.0, %v1605
      %1607 = vmatmul.f32.gmra.mxu0 %v1481
      %v1608 = vpop.f32.mrf.mxu0
      %v1609 = vadd.f32 0.0, %v1608
      %1610 = vmatmul.f32.gmra.mxu0 %v1484
      %v1611 = vpop.f32.mrf.mxu0
      %v1612 = vadd.f32 0.0, %v1611
      %1613 = vdwg.mxu0
      %v1614 = vadd.f32 %v1304, %v1507
      %v1615 = vadd.f32 %v1305, %v1510
      %v1616 = vadd.f32 %v1306, %v1513
      %v1617 = vadd.f32 %v1307, %v1516
      %v1618 = vadd.f32 %v1308, %v1519
      %v1619 = vadd.f32 %v1309, %v1522
      %v1620 = vadd.f32 %v1310, %v1525
      %v1621 = vadd.f32 %v1311, %v1528
      %v1622 = vadd.f32 %v1312, %v1531
      %v1623 = vadd.f32 %v1313, %v1534
      %v1624 = vadd.f32 %v1314, %v1537
      %v1625 = vadd.f32 %v1315, %v1540
      %v1626 = vadd.f32 %v1316, %v1543
      %v1627 = vadd.f32 %v1317, %v1546
      %v1628 = vadd.f32 %v1318, %v1549
      %v1629 = vadd.f32 %v1319, %v1552
      %v1630 = vadd.f32 %v1320, %v1555
      %v1631 = vadd.f32 %v1321, %v1558
      %v1632 = vadd.f32 %v1322, %v1561
      %v1633 = vadd.f32 %v1323, %v1564
      %v1634 = vadd.f32 %v1324, %v1567
      %v1635 = vadd.f32 %v1325, %v1570
      %v1636 = vadd.f32 %v1326, %v1573
      %v1637 = vadd.f32 %v1327, %v1576
      %v1638 = vadd.f32 %v1328, %v1579
      %v1639 = vadd.f32 %v1329, %v1582
      %v1640 = vadd.f32 %v1330, %v1585
      %v1641 = vadd.f32 %v1331, %v1588
      %v1642 = vadd.f32 %v1332, %v1591
      %v1643 = vadd.f32 %v1333, %v1594
      %v1644 = vadd.f32 %v1334, %v1597
      %v1645 = vadd.f32 %v1335, %v1600
      %v1646 = vadd.f32 %v1336, %v1603
      %v1647 = vadd.f32 %v1337, %v1606
      %v1648 = vadd.f32 %v1338, %v1609
      %v1649 = vadd.f32 %v1339, %v1612
      %v1650 = vld [vmem:[%s165 + $0x14] sm:$0xff]
      %v1651 = vld [vmem:[%s165 + $0x1c] sm:$0xff]
      %v1652 = vld [vmem:[%s165 + $0x24] sm:$0xff]
      %v1653 = vld [vmem:[%s165 + $0x2c] sm:$0xff]
      %v1654 = vld [vmem:[%s165 + $0x34] sm:$0xff]
      %v1655 = vld [vmem:[%s165 + $0x3c] sm:$0xff]
      %v1656 = vld [vmem:[%s165 + $0x44] sm:$0xff]
      %v1657 = vld [vmem:[%s165 + $0x4c] sm:$0xff]
      %v1658 = vld [vmem:[%s165 + $0x54] sm:$0xff]
      %v1659 = vld [vmem:[%s165 + $0x5c] sm:$0xff]
      %v1660 = vld [vmem:[%s165 + $0x64] sm:$0xff]
      %v1661 = vld [vmem:[%s165 + $0x6c] sm:$0xff]
      %v1662 = vld [vmem:[%s165 + $0x74] sm:$0xff]
      %v1663 = vld [vmem:[%s165 + $0x7c] sm:$0xff]
      %v1664 = vld [vmem:[%s165 + $0x84] sm:$0xff]
      %v1665 = vld [vmem:[%s165 + $0x8c] sm:$0xff]
      %v1666 = vld [vmem:[%s165 + $0x94] sm:$0xff]
      %v1667 = vld [vmem:[%s165 + $0x9c] sm:$0xff]
      %v1668 = vld [vmem:[%s165 + $0xa4] sm:$0xff]
      %v1669 = vld [vmem:[%s165 + $0xac] sm:$0xff]
      %v1670 = vld [vmem:[%s165 + $0xb4] sm:$0xff]
      %v1671 = vld [vmem:[%s165 + $0xbc] sm:$0xff]
      %v1672 = vld [vmem:[%s165 + $0xc4] sm:$0xff]
      %v1673 = vld [vmem:[%s165 + $0xcc] sm:$0xff]
      %v1674 = vld [vmem:[%s165 + $0xd4] sm:$0xff]
      %v1675 = vld [vmem:[%s165 + $0xdc] sm:$0xff]
      %v1676 = vld [vmem:[%s165 + $0xe4] sm:$0xff]
      %v1677 = vld [vmem:[%s165 + $0xec] sm:$0xff]
      %v1678 = vld [vmem:[%s165 + $0xf4] sm:$0xff]
      %v1679 = vld [vmem:[%s165 + $0xfc] sm:$0xff]
      %v1680 = vld [vmem:[%s165 + $0x104] sm:$0xff]
      %v1681 = vld [vmem:[%s165 + $0x10c] sm:$0xff]
      %v1682 = vld [vmem:[%s165 + $0x114] sm:$0xff]
      %v1683 = vld [vmem:[%s165 + $0x11c] sm:$0xff]
      %v1684 = vld [vmem:[%s165 + $0x124] sm:$0xff]
      %v1685 = vld [vmem:[%s165 + $0x12c] sm:$0xff]
      %s1686 = scalar_lea.vmem %s1, 20
      %v1687 = vld [vmem:[%s1686] sm:$0xf]
      %v1689 = vsel %vm246, %v1650, 0
      %v1692 = vsel %vm246, %v1651, 0
      %v1695 = vsel %vm246, %v1652, 0
      %v1698 = vsel %vm246, %v1653, 0
      %v1701 = vsel %vm246, %v1654, 0
      %v1704 = vsel %vm246, %v1655, 0
      %v1707 = vsel %vm246, %v1656, 0
      %v1710 = vsel %vm246, %v1657, 0
      %v1713 = vsel %vm246, %v1658, 0
      %v1716 = vsel %vm246, %v1659, 0
      %v1719 = vsel %vm246, %v1660, 0
      %v1722 = vsel %vm246, %v1661, 0
      %v1725 = vsel %vm246, %v1662, 0
      %v1728 = vsel %vm246, %v1663, 0
      %v1731 = vsel %vm246, %v1664, 0
      %v1734 = vsel %vm246, %v1665, 0
      %v1737 = vsel %vm246, %v1666, 0
      %v1740 = vsel %vm246, %v1667, 0
      %v1743 = vsel %vm246, %v1668, 0
      %v1746 = vsel %vm246, %v1669, 0
      %v1749 = vsel %vm246, %v1670, 0
      %v1752 = vsel %vm246, %v1671, 0
      %v1755 = vsel %vm246, %v1672, 0
      %v1758 = vsel %vm246, %v1673, 0
      %v1761 = vsel %vm246, %v1674, 0
      %v1764 = vsel %vm246, %v1675, 0
      %v1767 = vsel %vm246, %v1676, 0
      %v1770 = vsel %vm246, %v1677, 0
      %v1773 = vsel %vm246, %v1678, 0
      %v1776 = vsel %vm246, %v1679, 0
      %v1779 = vsel %vm246, %v1680, 0
      %v1782 = vsel %vm246, %v1681, 0
      %v1785 = vsel %vm246, %v1682, 0
      %v1788 = vsel %vm246, %v1683, 0
      %v1791 = vsel %vm246, %v1684, 0
      %v1794 = vsel %vm246, %v1685, 0
      %v1797 = vsel %vm355, %v1687, 0
      %1799 = vmatpush.msra.mxu0 0.0
      %1800 = vmatpush.msra.mxu0 0.0
      %1801 = vmatpush.msra.mxu0 0.0
      %1802 = vmatpush.msra.mxu0 0.0
      %1803 = vmatpush.msra.mxu0 0.0
      %1804 = vmatpush.msra.mxu0 0.0
      %1805 = vmatpush.msra.mxu0 0.0
      %1806 = vmatpush.msra.mxu0 0.0
      %1807 = vmatpush.msra.mxu0 0.0
      %1808 = vmatpush.msra.mxu0 0.0
      %1809 = vmatpush.msra.mxu0 0.0
      %1810 = vmatpush.msra.mxu0 0.0
      %1811 = vmatpush.msra.mxu0 0.0
      %1812 = vmatpush.msra.mxu0 0.0
      %1813 = vmatpush.msra.mxu0 0.0
      %1814 = vmatpush.msra.mxu0 %v1797
      %1815 = vmatmul.f32.gmra.mxu0 %v1689
      %v1816 = vpop.f32.mrf.mxu0
      %v1817 = vadd.f32 0.0, %v1816
      %1818 = vmatmul.f32.gmra.mxu0 %v1692
      %v1819 = vpop.f32.mrf.mxu0
      %v1820 = vadd.f32 0.0, %v1819
      %1821 = vmatmul.f32.gmra.mxu0 %v1695
      %v1822 = vpop.f32.mrf.mxu0
      %v1823 = vadd.f32 0.0, %v1822
      %1824 = vmatmul.f32.gmra.mxu0 %v1698
      %v1825 = vpop.f32.mrf.mxu0
      %v1826 = vadd.f32 0.0, %v1825
      %1827 = vmatmul.f32.gmra.mxu0 %v1701
      %v1828 = vpop.f32.mrf.mxu0
      %v1829 = vadd.f32 0.0, %v1828
      %1830 = vmatmul.f32.gmra.mxu0 %v1704
      %v1831 = vpop.f32.mrf.mxu0
      %v1832 = vadd.f32 0.0, %v1831
      %1833 = vmatmul.f32.gmra.mxu0 %v1707
      %v1834 = vpop.f32.mrf.mxu0
      %v1835 = vadd.f32 0.0, %v1834
      %1836 = vmatmul.f32.gmra.mxu0 %v1710
      %v1837 = vpop.f32.mrf.mxu0
      %v1838 = vadd.f32 0.0, %v1837
      %1839 = vmatmul.f32.gmra.mxu0 %v1713
      %v1840 = vpop.f32.mrf.mxu0
      %v1841 = vadd.f32 0.0, %v1840
      %1842 = vmatmul.f32.gmra.mxu0 %v1716
      %v1843 = vpop.f32.mrf.mxu0
      %v1844 = vadd.f32 0.0, %v1843
      %1845 = vmatmul.f32.gmra.mxu0 %v1719
      %v1846 = vpop.f32.mrf.mxu0
      %v1847 = vadd.f32 0.0, %v1846
      %1848 = vmatmul.f32.gmra.mxu0 %v1722
      %v1849 = vpop.f32.mrf.mxu0
      %v1850 = vadd.f32 0.0, %v1849
      %1851 = vmatmul.f32.gmra.mxu0 %v1725
      %v1852 = vpop.f32.mrf.mxu0
      %v1853 = vadd.f32 0.0, %v1852
      %1854 = vmatmul.f32.gmra.mxu0 %v1728
      %v1855 = vpop.f32.mrf.mxu0
      %v1856 = vadd.f32 0.0, %v1855
      %1857 = vmatmul.f32.gmra.mxu0 %v1731
      %v1858 = vpop.f32.mrf.mxu0
      %v1859 = vadd.f32 0.0, %v1858
      %1860 = vmatmul.f32.gmra.mxu0 %v1734
      %v1861 = vpop.f32.mrf.mxu0
      %v1862 = vadd.f32 0.0, %v1861
      %1863 = vmatmul.f32.gmra.mxu0 %v1737
      %v1864 = vpop.f32.mrf.mxu0
      %v1865 = vadd.f32 0.0, %v1864
      %1866 = vmatmul.f32.gmra.mxu0 %v1740
      %v1867 = vpop.f32.mrf.mxu0
      %v1868 = vadd.f32 0.0, %v1867
      %1869 = vmatmul.f32.gmra.mxu0 %v1743
      %v1870 = vpop.f32.mrf.mxu0
      %v1871 = vadd.f32 0.0, %v1870
      %1872 = vmatmul.f32.gmra.mxu0 %v1746
      %v1873 = vpop.f32.mrf.mxu0
      %v1874 = vadd.f32 0.0, %v1873
      %1875 = vmatmul.f32.gmra.mxu0 %v1749
      %v1876 = vpop.f32.mrf.mxu0
      %v1877 = vadd.f32 0.0, %v1876
      %1878 = vmatmul.f32.gmra.mxu0 %v1752
      %v1879 = vpop.f32.mrf.mxu0
      %v1880 = vadd.f32 0.0, %v1879
      %1881 = vmatmul.f32.gmra.mxu0 %v1755
      %v1882 = vpop.f32.mrf.mxu0
      %v1883 = vadd.f32 0.0, %v1882
      %1884 = vmatmul.f32.gmra.mxu0 %v1758
      %v1885 = vpop.f32.mrf.mxu0
      %v1886 = vadd.f32 0.0, %v1885
      %1887 = vmatmul.f32.gmra.mxu0 %v1761
      %v1888 = vpop.f32.mrf.mxu0
      %v1889 = vadd.f32 0.0, %v1888
      %1890 = vmatmul.f32.gmra.mxu0 %v1764
      %v1891 = vpop.f32.mrf.mxu0
      %v1892 = vadd.f32 0.0, %v1891
      %1893 = vmatmul.f32.gmra.mxu0 %v1767
      %v1894 = vpop.f32.mrf.mxu0
      %v1895 = vadd.f32 0.0, %v1894
      %1896 = vmatmul.f32.gmra.mxu0 %v1770
      %v1897 = vpop.f32.mrf.mxu0
      %v1898 = vadd.f32 0.0, %v1897
      %1899 = vmatmul.f32.gmra.mxu0 %v1773
      %v1900 = vpop.f32.mrf.mxu0
      %v1901 = vadd.f32 0.0, %v1900
      %1902 = vmatmul.f32.gmra.mxu0 %v1776
      %v1903 = vpop.f32.mrf.mxu0
      %v1904 = vadd.f32 0.0, %v1903
      %1905 = vmatmul.f32.gmra.mxu0 %v1779
      %v1906 = vpop.f32.mrf.mxu0
      %v1907 = vadd.f32 0.0, %v1906
      %1908 = vmatmul.f32.gmra.mxu0 %v1782
      %v1909 = vpop.f32.mrf.mxu0
      %v1910 = vadd.f32 0.0, %v1909
      %1911 = vmatmul.f32.gmra.mxu0 %v1785
      %v1912 = vpop.f32.mrf.mxu0
      %v1913 = vadd.f32 0.0, %v1912
      %1914 = vmatmul.f32.gmra.mxu0 %v1788
      %v1915 = vpop.f32.mrf.mxu0
      %v1916 = vadd.f32 0.0, %v1915
      %1917 = vmatmul.f32.gmra.mxu0 %v1791
      %v1918 = vpop.f32.mrf.mxu0
      %v1919 = vadd.f32 0.0, %v1918
      %1920 = vmatmul.f32.gmra.mxu0 %v1794
      %v1921 = vpop.f32.mrf.mxu0
      %v1922 = vadd.f32 0.0, %v1921
      %1923 = vdwg.mxu0
      %v1924 = vadd.f32 %v1614, %v1817
      %v1925 = vadd.f32 %v1615, %v1820
      %v1926 = vadd.f32 %v1616, %v1823
      %v1927 = vadd.f32 %v1617, %v1826
      %v1928 = vadd.f32 %v1618, %v1829
      %v1929 = vadd.f32 %v1619, %v1832
      %v1930 = vadd.f32 %v1620, %v1835
      %v1931 = vadd.f32 %v1621, %v1838
      %v1932 = vadd.f32 %v1622, %v1841
      %v1933 = vadd.f32 %v1623, %v1844
      %v1934 = vadd.f32 %v1624, %v1847
      %v1935 = vadd.f32 %v1625, %v1850
      %v1936 = vadd.f32 %v1626, %v1853
      %v1937 = vadd.f32 %v1627, %v1856
      %v1938 = vadd.f32 %v1628, %v1859
      %v1939 = vadd.f32 %v1629, %v1862
      %v1940 = vadd.f32 %v1630, %v1865
      %v1941 = vadd.f32 %v1631, %v1868
      %v1942 = vadd.f32 %v1632, %v1871
      %v1943 = vadd.f32 %v1633, %v1874
      %v1944 = vadd.f32 %v1634, %v1877
      %v1945 = vadd.f32 %v1635, %v1880
      %v1946 = vadd.f32 %v1636, %v1883
      %v1947 = vadd.f32 %v1637, %v1886
      %v1948 = vadd.f32 %v1638, %v1889
      %v1949 = vadd.f32 %v1639, %v1892
      %v1950 = vadd.f32 %v1640, %v1895
      %v1951 = vadd.f32 %v1641, %v1898
      %v1952 = vadd.f32 %v1642, %v1901
      %v1953 = vadd.f32 %v1643, %v1904
      %v1954 = vadd.f32 %v1644, %v1907
      %v1955 = vadd.f32 %v1645, %v1910
      %v1956 = vadd.f32 %v1646, %v1913
      %v1957 = vadd.f32 %v1647, %v1916
      %v1958 = vadd.f32 %v1648, %v1919
      %v1959 = vadd.f32 %v1649, %v1922
      %v1960 = vld [vmem:[%s165 + $0x24] sm:$0xff]
      %v1961 = vld [vmem:[%s165 + $0x2c] sm:$0xff]
      %v1962 = vld [vmem:[%s165 + $0x34] sm:$0xff]
      %v1963 = vld [vmem:[%s165 + $0x3c] sm:$0xff]
      %v1964 = vld [vmem:[%s165 + $0x44] sm:$0xff]
      %v1965 = vld [vmem:[%s165 + $0x4c] sm:$0xff]
      %v1966 = vld [vmem:[%s165 + $0x54] sm:$0xff]
      %v1967 = vld [vmem:[%s165 + $0x5c] sm:$0xff]
      %v1968 = vld [vmem:[%s165 + $0x64] sm:$0xff]
      %v1969 = vld [vmem:[%s165 + $0x6c] sm:$0xff]
      %v1970 = vld [vmem:[%s165 + $0x74] sm:$0xff]
      %v1971 = vld [vmem:[%s165 + $0x7c] sm:$0xff]
      %v1972 = vld [vmem:[%s165 + $0x84] sm:$0xff]
      %v1973 = vld [vmem:[%s165 + $0x8c] sm:$0xff]
      %v1974 = vld [vmem:[%s165 + $0x94] sm:$0xff]
      %v1975 = vld [vmem:[%s165 + $0x9c] sm:$0xff]
      %v1976 = vld [vmem:[%s165 + $0xa4] sm:$0xff]
      %v1977 = vld [vmem:[%s165 + $0xac] sm:$0xff]
      %v1978 = vld [vmem:[%s165 + $0xb4] sm:$0xff]
      %v1979 = vld [vmem:[%s165 + $0xbc] sm:$0xff]
      %v1980 = vld [vmem:[%s165 + $0xc4] sm:$0xff]
      %v1981 = vld [vmem:[%s165 + $0xcc] sm:$0xff]
      %v1982 = vld [vmem:[%s165 + $0xd4] sm:$0xff]
      %v1983 = vld [vmem:[%s165 + $0xdc] sm:$0xff]
      %v1984 = vld [vmem:[%s165 + $0xe4] sm:$0xff]
      %v1985 = vld [vmem:[%s165 + $0xec] sm:$0xff]
      %v1986 = vld [vmem:[%s165 + $0xf4] sm:$0xff]
      %v1987 = vld [vmem:[%s165 + $0xfc] sm:$0xff]
      %v1988 = vld [vmem:[%s165 + $0x104] sm:$0xff]
      %v1989 = vld [vmem:[%s165 + $0x10c] sm:$0xff]
      %v1990 = vld [vmem:[%s165 + $0x114] sm:$0xff]
      %v1991 = vld [vmem:[%s165 + $0x11c] sm:$0xff]
      %v1992 = vld [vmem:[%s165 + $0x124] sm:$0xff]
      %v1993 = vld [vmem:[%s165 + $0x12c] sm:$0xff]
      %v1994 = vld [vmem:[%s165 + $0x134] sm:$0xff]
      %v1995 = vld [vmem:[%s165 + $0x13c] sm:$0xff]
      %s1996 = scalar_lea.vmem %s1, 24
      %v1997 = vld [vmem:[%s1996] sm:$0xf]
      %v1999 = vsel %vm246, %v1960, 0
      %v2002 = vsel %vm246, %v1961, 0
      %v2005 = vsel %vm246, %v1962, 0
      %v2008 = vsel %vm246, %v1963, 0
      %v2011 = vsel %vm246, %v1964, 0
      %v2014 = vsel %vm246, %v1965, 0
      %v2017 = vsel %vm246, %v1966, 0
      %v2020 = vsel %vm246, %v1967, 0
      %v2023 = vsel %vm246, %v1968, 0
      %v2026 = vsel %vm246, %v1969, 0
      %v2029 = vsel %vm246, %v1970, 0
      %v2032 = vsel %vm246, %v1971, 0
      %v2035 = vsel %vm246, %v1972, 0
      %v2038 = vsel %vm246, %v1973, 0
      %v2041 = vsel %vm246, %v1974, 0
      %v2044 = vsel %vm246, %v1975, 0
      %v2047 = vsel %vm246, %v1976, 0
      %v2050 = vsel %vm246, %v1977, 0
      %v2053 = vsel %vm246, %v1978, 0
      %v2056 = vsel %vm246, %v1979, 0
      %v2059 = vsel %vm246, %v1980, 0
      %v2062 = vsel %vm246, %v1981, 0
      %v2065 = vsel %vm246, %v1982, 0
      %v2068 = vsel %vm246, %v1983, 0
      %v2071 = vsel %vm246, %v1984, 0
      %v2074 = vsel %vm246, %v1985, 0
      %v2077 = vsel %vm246, %v1986, 0
      %v2080 = vsel %vm246, %v1987, 0
      %v2083 = vsel %vm246, %v1988, 0
      %v2086 = vsel %vm246, %v1989, 0
      %v2089 = vsel %vm246, %v1990, 0
      %v2092 = vsel %vm246, %v1991, 0
      %v2095 = vsel %vm246, %v1992, 0
      %v2098 = vsel %vm246, %v1993, 0
      %v2101 = vsel %vm246, %v1994, 0
      %v2104 = vsel %vm246, %v1995, 0
      %v2107 = vsel %vm355, %v1997, 0
      %2109 = vmatpush.msra.mxu0 0.0
      %2110 = vmatpush.msra.mxu0 0.0
      %2111 = vmatpush.msra.mxu0 0.0
      %2112 = vmatpush.msra.mxu0 0.0
      %2113 = vmatpush.msra.mxu0 0.0
      %2114 = vmatpush.msra.mxu0 0.0
      %2115 = vmatpush.msra.mxu0 0.0
      %2116 = vmatpush.msra.mxu0 0.0
      %2117 = vmatpush.msra.mxu0 0.0
      %2118 = vmatpush.msra.mxu0 0.0
      %2119 = vmatpush.msra.mxu0 0.0
      %2120 = vmatpush.msra.mxu0 0.0
      %2121 = vmatpush.msra.mxu0 0.0
      %2122 = vmatpush.msra.mxu0 0.0
      %2123 = vmatpush.msra.mxu0 0.0
      %2124 = vmatpush.msra.mxu0 %v2107
      %2125 = vmatmul.f32.gmra.mxu0 %v1999
      %v2126 = vpop.f32.mrf.mxu0
      %v2127 = vadd.f32 0.0, %v2126
      %2128 = vmatmul.f32.gmra.mxu0 %v2002
      %v2129 = vpop.f32.mrf.mxu0
      %v2130 = vadd.f32 0.0, %v2129
      %2131 = vmatmul.f32.gmra.mxu0 %v2005
      %v2132 = vpop.f32.mrf.mxu0
      %v2133 = vadd.f32 0.0, %v2132
      %2134 = vmatmul.f32.gmra.mxu0 %v2008
      %v2135 = vpop.f32.mrf.mxu0
      %v2136 = vadd.f32 0.0, %v2135
      %2137 = vmatmul.f32.gmra.mxu0 %v2011
      %v2138 = vpop.f32.mrf.mxu0
      %v2139 = vadd.f32 0.0, %v2138
      %2140 = vmatmul.f32.gmra.mxu0 %v2014
      %v2141 = vpop.f32.mrf.mxu0
      %v2142 = vadd.f32 0.0, %v2141
      %2143 = vmatmul.f32.gmra.mxu0 %v2017
      %v2144 = vpop.f32.mrf.mxu0
      %v2145 = vadd.f32 0.0, %v2144
      %2146 = vmatmul.f32.gmra.mxu0 %v2020
      %v2147 = vpop.f32.mrf.mxu0
      %v2148 = vadd.f32 0.0, %v2147
      %2149 = vmatmul.f32.gmra.mxu0 %v2023
      %v2150 = vpop.f32.mrf.mxu0
      %v2151 = vadd.f32 0.0, %v2150
      %2152 = vmatmul.f32.gmra.mxu0 %v2026
      %v2153 = vpop.f32.mrf.mxu0
      %v2154 = vadd.f32 0.0, %v2153
      %2155 = vmatmul.f32.gmra.mxu0 %v2029
      %v2156 = vpop.f32.mrf.mxu0
      %v2157 = vadd.f32 0.0, %v2156
      %2158 = vmatmul.f32.gmra.mxu0 %v2032
      %v2159 = vpop.f32.mrf.mxu0
      %v2160 = vadd.f32 0.0, %v2159
      %2161 = vmatmul.f32.gmra.mxu0 %v2035
      %v2162 = vpop.f32.mrf.mxu0
      %v2163 = vadd.f32 0.0, %v2162
      %2164 = vmatmul.f32.gmra.mxu0 %v2038
      %v2165 = vpop.f32.mrf.mxu0
      %v2166 = vadd.f32 0.0, %v2165
      %2167 = vmatmul.f32.gmra.mxu0 %v2041
      %v2168 = vpop.f32.mrf.mxu0
      %v2169 = vadd.f32 0.0, %v2168
      %2170 = vmatmul.f32.gmra.mxu0 %v2044
      %v2171 = vpop.f32.mrf.mxu0
      %v2172 = vadd.f32 0.0, %v2171
      %2173 = vmatmul.f32.gmra.mxu0 %v2047
      %v2174 = vpop.f32.mrf.mxu0
      %v2175 = vadd.f32 0.0, %v2174
      %2176 = vmatmul.f32.gmra.mxu0 %v2050
      %v2177 = vpop.f32.mrf.mxu0
      %v2178 = vadd.f32 0.0, %v2177
      %2179 = vmatmul.f32.gmra.mxu0 %v2053
      %v2180 = vpop.f32.mrf.mxu0
      %v2181 = vadd.f32 0.0, %v2180
      %2182 = vmatmul.f32.gmra.mxu0 %v2056
      %v2183 = vpop.f32.mrf.mxu0
      %v2184 = vadd.f32 0.0, %v2183
      %2185 = vmatmul.f32.gmra.mxu0 %v2059
      %v2186 = vpop.f32.mrf.mxu0
      %v2187 = vadd.f32 0.0, %v2186
      %2188 = vmatmul.f32.gmra.mxu0 %v2062
      %v2189 = vpop.f32.mrf.mxu0
      %v2190 = vadd.f32 0.0, %v2189
      %2191 = vmatmul.f32.gmra.mxu0 %v2065
      %v2192 = vpop.f32.mrf.mxu0
      %v2193 = vadd.f32 0.0, %v2192
      %2194 = vmatmul.f32.gmra.mxu0 %v2068
      %v2195 = vpop.f32.mrf.mxu0
      %v2196 = vadd.f32 0.0, %v2195
      %2197 = vmatmul.f32.gmra.mxu0 %v2071
      %v2198 = vpop.f32.mrf.mxu0
      %v2199 = vadd.f32 0.0, %v2198
      %2200 = vmatmul.f32.gmra.mxu0 %v2074
      %v2201 = vpop.f32.mrf.mxu0
      %v2202 = vadd.f32 0.0, %v2201
      %2203 = vmatmul.f32.gmra.mxu0 %v2077
      %v2204 = vpop.f32.mrf.mxu0
      %v2205 = vadd.f32 0.0, %v2204
      %2206 = vmatmul.f32.gmra.mxu0 %v2080
      %v2207 = vpop.f32.mrf.mxu0
      %v2208 = vadd.f32 0.0, %v2207
      %2209 = vmatmul.f32.gmra.mxu0 %v2083
      %v2210 = vpop.f32.mrf.mxu0
      %v2211 = vadd.f32 0.0, %v2210
      %2212 = vmatmul.f32.gmra.mxu0 %v2086
      %v2213 = vpop.f32.mrf.mxu0
      %v2214 = vadd.f32 0.0, %v2213
      %2215 = vmatmul.f32.gmra.mxu0 %v2089
      %v2216 = vpop.f32.mrf.mxu0
      %v2217 = vadd.f32 0.0, %v2216
      %2218 = vmatmul.f32.gmra.mxu0 %v2092
      %v2219 = vpop.f32.mrf.mxu0
      %v2220 = vadd.f32 0.0, %v2219
      %2221 = vmatmul.f32.gmra.mxu0 %v2095
      %v2222 = vpop.f32.mrf.mxu0
      %v2223 = vadd.f32 0.0, %v2222
      %2224 = vmatmul.f32.gmra.mxu0 %v2098
      %v2225 = vpop.f32.mrf.mxu0
      %v2226 = vadd.f32 0.0, %v2225
      %2227 = vmatmul.f32.gmra.mxu0 %v2101
      %v2228 = vpop.f32.mrf.mxu0
      %v2229 = vadd.f32 0.0, %v2228
      %2230 = vmatmul.f32.gmra.mxu0 %v2104
      %v2231 = vpop.f32.mrf.mxu0
      %v2232 = vadd.f32 0.0, %v2231
      %2233 = vdwg.mxu0
      %v2234 = vadd.f32 %v1924, %v2127
      %v2235 = vadd.f32 %v1925, %v2130
      %v2236 = vadd.f32 %v1926, %v2133
      %v2237 = vadd.f32 %v1927, %v2136
      %v2238 = vadd.f32 %v1928, %v2139
      %v2239 = vadd.f32 %v1929, %v2142
      %v2240 = vadd.f32 %v1930, %v2145
      %v2241 = vadd.f32 %v1931, %v2148
      %v2242 = vadd.f32 %v1932, %v2151
      %v2243 = vadd.f32 %v1933, %v2154
      %v2244 = vadd.f32 %v1934, %v2157
      %v2245 = vadd.f32 %v1935, %v2160
      %v2246 = vadd.f32 %v1936, %v2163
      %v2247 = vadd.f32 %v1937, %v2166
      %v2248 = vadd.f32 %v1938, %v2169
      %v2249 = vadd.f32 %v1939, %v2172
      %v2250 = vadd.f32 %v1940, %v2175
      %v2251 = vadd.f32 %v1941, %v2178
      %v2252 = vadd.f32 %v1942, %v2181
      %v2253 = vadd.f32 %v1943, %v2184
      %v2254 = vadd.f32 %v1944, %v2187
      %v2255 = vadd.f32 %v1945, %v2190
      %v2256 = vadd.f32 %v1946, %v2193
      %v2257 = vadd.f32 %v1947, %v2196
      %v2258 = vadd.f32 %v1948, %v2199
      %v2259 = vadd.f32 %v1949, %v2202
      %v2260 = vadd.f32 %v1950, %v2205
      %v2261 = vadd.f32 %v1951, %v2208
      %v2262 = vadd.f32 %v1952, %v2211
      %v2263 = vadd.f32 %v1953, %v2214
      %v2264 = vadd.f32 %v1954, %v2217
      %v2265 = vadd.f32 %v1955, %v2220
      %v2266 = vadd.f32 %v1956, %v2223
      %v2267 = vadd.f32 %v1957, %v2226
      %v2268 = vadd.f32 %v1958, %v2229
      %v2269 = vadd.f32 %v1959, %v2232
      %v2270 = vld [vmem:[%s165 + $0x25] sm:$0xff]
      %v2271 = vld [vmem:[%s165 + $0x2d] sm:$0xff]
      %v2272 = vld [vmem:[%s165 + $0x35] sm:$0xff]
      %v2273 = vld [vmem:[%s165 + $0x3d] sm:$0xff]
      %v2274 = vld [vmem:[%s165 + $0x45] sm:$0xff]
      %v2275 = vld [vmem:[%s165 + $0x4d] sm:$0xff]
      %v2276 = vld [vmem:[%s165 + $0x55] sm:$0xff]
      %v2277 = vld [vmem:[%s165 + $0x5d] sm:$0xff]
      %v2278 = vld [vmem:[%s165 + $0x65] sm:$0xff]
      %v2279 = vld [vmem:[%s165 + $0x6d] sm:$0xff]
      %v2280 = vld [vmem:[%s165 + $0x75] sm:$0xff]
      %v2281 = vld [vmem:[%s165 + $0x7d] sm:$0xff]
      %v2282 = vld [vmem:[%s165 + $0x85] sm:$0xff]
      %v2283 = vld [vmem:[%s165 + $0x8d] sm:$0xff]
      %v2284 = vld [vmem:[%s165 + $0x95] sm:$0xff]
      %v2285 = vld [vmem:[%s165 + $0x9d] sm:$0xff]
      %v2286 = vld [vmem:[%s165 + $0xa5] sm:$0xff]
      %v2287 = vld [vmem:[%s165 + $0xad] sm:$0xff]
      %v2288 = vld [vmem:[%s165 + $0xb5] sm:$0xff]
      %v2289 = vld [vmem:[%s165 + $0xbd] sm:$0xff]
      %v2290 = vld [vmem:[%s165 + $0xc5] sm:$0xff]
      %v2291 = vld [vmem:[%s165 + $0xcd] sm:$0xff]
      %v2292 = vld [vmem:[%s165 + $0xd5] sm:$0xff]
      %v2293 = vld [vmem:[%s165 + $0xdd] sm:$0xff]
      %v2294 = vld [vmem:[%s165 + $0xe5] sm:$0xff]
      %v2295 = vld [vmem:[%s165 + $0xed] sm:$0xff]
      %v2296 = vld [vmem:[%s165 + $0xf5] sm:$0xff]
      %v2297 = vld [vmem:[%s165 + $0xfd] sm:$0xff]
      %v2298 = vld [vmem:[%s165 + $0x105] sm:$0xff]
      %v2299 = vld [vmem:[%s165 + $0x10d] sm:$0xff]
      %v2300 = vld [vmem:[%s165 + $0x115] sm:$0xff]
      %v2301 = vld [vmem:[%s165 + $0x11d] sm:$0xff]
      %v2302 = vld [vmem:[%s165 + $0x125] sm:$0xff]
      %v2303 = vld [vmem:[%s165 + $0x12d] sm:$0xff]
      %v2304 = vld [vmem:[%s165 + $0x135] sm:$0xff]
      %v2305 = vld [vmem:[%s165 + $0x13d] sm:$0xff]
      %s2306 = scalar_lea.vmem %s1, 28
      %v2307 = vld [vmem:[%s2306] sm:$0xf]
      %v2309 = vsel %vm246, %v2270, 0
      %v2312 = vsel %vm246, %v2271, 0
      %v2315 = vsel %vm246, %v2272, 0
      %v2318 = vsel %vm246, %v2273, 0
      %v2321 = vsel %vm246, %v2274, 0
      %v2324 = vsel %vm246, %v2275, 0
      %v2327 = vsel %vm246, %v2276, 0
      %v2330 = vsel %vm246, %v2277, 0
      %v2333 = vsel %vm246, %v2278, 0
      %v2336 = vsel %vm246, %v2279, 0
      %v2339 = vsel %vm246, %v2280, 0
      %v2342 = vsel %vm246, %v2281, 0
      %v2345 = vsel %vm246, %v2282, 0
      %v2348 = vsel %vm246, %v2283, 0
      %v2351 = vsel %vm246, %v2284, 0
      %v2354 = vsel %vm246, %v2285, 0
      %v2357 = vsel %vm246, %v2286, 0
      %v2360 = vsel %vm246, %v2287, 0
      %v2363 = vsel %vm246, %v2288, 0
      %v2366 = vsel %vm246, %v2289, 0
      %v2369 = vsel %vm246, %v2290, 0
      %v2372 = vsel %vm246, %v2291, 0
      %v2375 = vsel %vm246, %v2292, 0
      %v2378 = vsel %vm246, %v2293, 0
      %v2381 = vsel %vm246, %v2294, 0
      %v2384 = vsel %vm246, %v2295, 0
      %v2387 = vsel %vm246, %v2296, 0
      %v2390 = vsel %vm246, %v2297, 0
      %v2393 = vsel %vm246, %v2298, 0
      %v2396 = vsel %vm246, %v2299, 0
      %v2399 = vsel %vm246, %v2300, 0
      %v2402 = vsel %vm246, %v2301, 0
      %v2405 = vsel %vm246, %v2302, 0
      %v2408 = vsel %vm246, %v2303, 0
      %v2411 = vsel %vm246, %v2304, 0
      %v2414 = vsel %vm246, %v2305, 0
      %v2417 = vsel %vm355, %v2307, 0
      %2419 = vmatpush.msra.mxu0 0.0
      %2420 = vmatpush.msra.mxu0 0.0
      %2421 = vmatpush.msra.mxu0 0.0
      %2422 = vmatpush.msra.mxu0 0.0
      %2423 = vmatpush.msra.mxu0 0.0
      %2424 = vmatpush.msra.mxu0 0.0
      %2425 = vmatpush.msra.mxu0 0.0
      %2426 = vmatpush.msra.mxu0 0.0
      %2427 = vmatpush.msra.mxu0 0.0
      %2428 = vmatpush.msra.mxu0 0.0
      %2429 = vmatpush.msra.mxu0 0.0
      %2430 = vmatpush.msra.mxu0 0.0
      %2431 = vmatpush.msra.mxu0 0.0
      %2432 = vmatpush.msra.mxu0 0.0
      %2433 = vmatpush.msra.mxu0 0.0
      %2434 = vmatpush.msra.mxu0 %v2417
      %2435 = vmatmul.f32.gmra.mxu0 %v2309
      %v2436 = vpop.f32.mrf.mxu0
      %v2437 = vadd.f32 0.0, %v2436
      %2438 = vmatmul.f32.gmra.mxu0 %v2312
      %v2439 = vpop.f32.mrf.mxu0
      %v2440 = vadd.f32 0.0, %v2439
      %2441 = vmatmul.f32.gmra.mxu0 %v2315
      %v2442 = vpop.f32.mrf.mxu0
      %v2443 = vadd.f32 0.0, %v2442
      %2444 = vmatmul.f32.gmra.mxu0 %v2318
      %v2445 = vpop.f32.mrf.mxu0
      %v2446 = vadd.f32 0.0, %v2445
      %2447 = vmatmul.f32.gmra.mxu0 %v2321
      %v2448 = vpop.f32.mrf.mxu0
      %v2449 = vadd.f32 0.0, %v2448
      %2450 = vmatmul.f32.gmra.mxu0 %v2324
      %v2451 = vpop.f32.mrf.mxu0
      %v2452 = vadd.f32 0.0, %v2451
      %2453 = vmatmul.f32.gmra.mxu0 %v2327
      %v2454 = vpop.f32.mrf.mxu0
      %v2455 = vadd.f32 0.0, %v2454
      %2456 = vmatmul.f32.gmra.mxu0 %v2330
      %v2457 = vpop.f32.mrf.mxu0
      %v2458 = vadd.f32 0.0, %v2457
      %2459 = vmatmul.f32.gmra.mxu0 %v2333
      %v2460 = vpop.f32.mrf.mxu0
      %v2461 = vadd.f32 0.0, %v2460
      %2462 = vmatmul.f32.gmra.mxu0 %v2336
      %v2463 = vpop.f32.mrf.mxu0
      %v2464 = vadd.f32 0.0, %v2463
      %2465 = vmatmul.f32.gmra.mxu0 %v2339
      %v2466 = vpop.f32.mrf.mxu0
      %v2467 = vadd.f32 0.0, %v2466
      %2468 = vmatmul.f32.gmra.mxu0 %v2342
      %v2469 = vpop.f32.mrf.mxu0
      %v2470 = vadd.f32 0.0, %v2469
      %2471 = vmatmul.f32.gmra.mxu0 %v2345
      %v2472 = vpop.f32.mrf.mxu0
      %v2473 = vadd.f32 0.0, %v2472
      %2474 = vmatmul.f32.gmra.mxu0 %v2348
      %v2475 = vpop.f32.mrf.mxu0
      %v2476 = vadd.f32 0.0, %v2475
      %2477 = vmatmul.f32.gmra.mxu0 %v2351
      %v2478 = vpop.f32.mrf.mxu0
      %v2479 = vadd.f32 0.0, %v2478
      %2480 = vmatmul.f32.gmra.mxu0 %v2354
      %v2481 = vpop.f32.mrf.mxu0
      %v2482 = vadd.f32 0.0, %v2481
      %2483 = vmatmul.f32.gmra.mxu0 %v2357
      %v2484 = vpop.f32.mrf.mxu0
      %v2485 = vadd.f32 0.0, %v2484
      %2486 = vmatmul.f32.gmra.mxu0 %v2360
      %v2487 = vpop.f32.mrf.mxu0
      %v2488 = vadd.f32 0.0, %v2487
      %2489 = vmatmul.f32.gmra.mxu0 %v2363
      %v2490 = vpop.f32.mrf.mxu0
      %v2491 = vadd.f32 0.0, %v2490
      %2492 = vmatmul.f32.gmra.mxu0 %v2366
      %v2493 = vpop.f32.mrf.mxu0
      %v2494 = vadd.f32 0.0, %v2493
      %2495 = vmatmul.f32.gmra.mxu0 %v2369
      %v2496 = vpop.f32.mrf.mxu0
      %v2497 = vadd.f32 0.0, %v2496
      %2498 = vmatmul.f32.gmra.mxu0 %v2372
      %v2499 = vpop.f32.mrf.mxu0
      %v2500 = vadd.f32 0.0, %v2499
      %2501 = vmatmul.f32.gmra.mxu0 %v2375
      %v2502 = vpop.f32.mrf.mxu0
      %v2503 = vadd.f32 0.0, %v2502
      %2504 = vmatmul.f32.gmra.mxu0 %v2378
      %v2505 = vpop.f32.mrf.mxu0
      %v2506 = vadd.f32 0.0, %v2505
      %2507 = vmatmul.f32.gmra.mxu0 %v2381
      %v2508 = vpop.f32.mrf.mxu0
      %v2509 = vadd.f32 0.0, %v2508
      %2510 = vmatmul.f32.gmra.mxu0 %v2384
      %v2511 = vpop.f32.mrf.mxu0
      %v2512 = vadd.f32 0.0, %v2511
      %2513 = vmatmul.f32.gmra.mxu0 %v2387
      %v2514 = vpop.f32.mrf.mxu0
      %v2515 = vadd.f32 0.0, %v2514
      %2516 = vmatmul.f32.gmra.mxu0 %v2390
      %v2517 = vpop.f32.mrf.mxu0
      %v2518 = vadd.f32 0.0, %v2517
      %2519 = vmatmul.f32.gmra.mxu0 %v2393
      %v2520 = vpop.f32.mrf.mxu0
      %v2521 = vadd.f32 0.0, %v2520
      %2522 = vmatmul.f32.gmra.mxu0 %v2396
      %v2523 = vpop.f32.mrf.mxu0
      %v2524 = vadd.f32 0.0, %v2523
      %2525 = vmatmul.f32.gmra.mxu0 %v2399
      %v2526 = vpop.f32.mrf.mxu0
      %v2527 = vadd.f32 0.0, %v2526
      %2528 = vmatmul.f32.gmra.mxu0 %v2402
      %v2529 = vpop.f32.mrf.mxu0
      %v2530 = vadd.f32 0.0, %v2529
      %2531 = vmatmul.f32.gmra.mxu0 %v2405
      %v2532 = vpop.f32.mrf.mxu0
      %v2533 = vadd.f32 0.0, %v2532
      %2534 = vmatmul.f32.gmra.mxu0 %v2408
      %v2535 = vpop.f32.mrf.mxu0
      %v2536 = vadd.f32 0.0, %v2535
      %2537 = vmatmul.f32.gmra.mxu0 %v2411
      %v2538 = vpop.f32.mrf.mxu0
      %v2539 = vadd.f32 0.0, %v2538
      %2540 = vmatmul.f32.gmra.mxu0 %v2414
      %v2541 = vpop.f32.mrf.mxu0
      %v2542 = vadd.f32 0.0, %v2541
      %2543 = vdwg.mxu0
      %v2544 = vadd.f32 %v2234, %v2437
      %v2545 = vadd.f32 %v2235, %v2440
      %v2546 = vadd.f32 %v2236, %v2443
      %v2547 = vadd.f32 %v2237, %v2446
      %v2548 = vadd.f32 %v2238, %v2449
      %v2549 = vadd.f32 %v2239, %v2452
      %v2550 = vadd.f32 %v2240, %v2455
      %v2551 = vadd.f32 %v2241, %v2458
      %v2552 = vadd.f32 %v2242, %v2461
      %v2553 = vadd.f32 %v2243, %v2464
      %v2554 = vadd.f32 %v2244, %v2467
      %v2555 = vadd.f32 %v2245, %v2470
      %v2556 = vadd.f32 %v2246, %v2473
      %v2557 = vadd.f32 %v2247, %v2476
      %v2558 = vadd.f32 %v2248, %v2479
      %v2559 = vadd.f32 %v2249, %v2482
      %v2560 = vadd.f32 %v2250, %v2485
      %v2561 = vadd.f32 %v2251, %v2488
      %v2562 = vadd.f32 %v2252, %v2491
      %v2563 = vadd.f32 %v2253, %v2494
      %v2564 = vadd.f32 %v2254, %v2497
      %v2565 = vadd.f32 %v2255, %v2500
      %v2566 = vadd.f32 %v2256, %v2503
      %v2567 = vadd.f32 %v2257, %v2506
      %v2568 = vadd.f32 %v2258, %v2509
      %v2569 = vadd.f32 %v2259, %v2512
      %v2570 = vadd.f32 %v2260, %v2515
      %v2571 = vadd.f32 %v2261, %v2518
      %v2572 = vadd.f32 %v2262, %v2521
      %v2573 = vadd.f32 %v2263, %v2524
      %v2574 = vadd.f32 %v2264, %v2527
      %v2575 = vadd.f32 %v2265, %v2530
      %v2576 = vadd.f32 %v2266, %v2533
      %v2577 = vadd.f32 %v2267, %v2536
      %v2578 = vadd.f32 %v2268, %v2539
      %v2579 = vadd.f32 %v2269, %v2542
      %v2580 = vld [vmem:[%s165 + $0x26] sm:$0xff]
      %v2581 = vld [vmem:[%s165 + $0x2e] sm:$0xff]
      %v2582 = vld [vmem:[%s165 + $0x36] sm:$0xff]
      %v2583 = vld [vmem:[%s165 + $0x3e] sm:$0xff]
      %v2584 = vld [vmem:[%s165 + $0x46] sm:$0xff]
      %v2585 = vld [vmem:[%s165 + $0x4e] sm:$0xff]
      %v2586 = vld [vmem:[%s165 + $0x56] sm:$0xff]
      %v2587 = vld [vmem:[%s165 + $0x5e] sm:$0xff]
      %v2588 = vld [vmem:[%s165 + $0x66] sm:$0xff]
      %v2589 = vld [vmem:[%s165 + $0x6e] sm:$0xff]
      %v2590 = vld [vmem:[%s165 + $0x76] sm:$0xff]
      %v2591 = vld [vmem:[%s165 + $0x7e] sm:$0xff]
      %v2592 = vld [vmem:[%s165 + $0x86] sm:$0xff]
      %v2593 = vld [vmem:[%s165 + $0x8e] sm:$0xff]
      %v2594 = vld [vmem:[%s165 + $0x96] sm:$0xff]
      %v2595 = vld [vmem:[%s165 + $0x9e] sm:$0xff]
      %v2596 = vld [vmem:[%s165 + $0xa6] sm:$0xff]
      %v2597 = vld [vmem:[%s165 + $0xae] sm:$0xff]
      %v2598 = vld [vmem:[%s165 + $0xb6] sm:$0xff]
      %v2599 = vld [vmem:[%s165 + $0xbe] sm:$0xff]
      %v2600 = vld [vmem:[%s165 + $0xc6] sm:$0xff]
      %v2601 = vld [vmem:[%s165 + $0xce] sm:$0xff]
      %v2602 = vld [vmem:[%s165 + $0xd6] sm:$0xff]
      %v2603 = vld [vmem:[%s165 + $0xde] sm:$0xff]
      %v2604 = vld [vmem:[%s165 + $0xe6] sm:$0xff]
      %v2605 = vld [vmem:[%s165 + $0xee] sm:$0xff]
      %v2606 = vld [vmem:[%s165 + $0xf6] sm:$0xff]
      %v2607 = vld [vmem:[%s165 + $0xfe] sm:$0xff]
      %v2608 = vld [vmem:[%s165 + $0x106] sm:$0xff]
      %v2609 = vld [vmem:[%s165 + $0x10e] sm:$0xff]
      %v2610 = vld [vmem:[%s165 + $0x116] sm:$0xff]
      %v2611 = vld [vmem:[%s165 + $0x11e] sm:$0xff]
      %v2612 = vld [vmem:[%s165 + $0x126] sm:$0xff]
      %v2613 = vld [vmem:[%s165 + $0x12e] sm:$0xff]
      %v2614 = vld [vmem:[%s165 + $0x136] sm:$0xff]
      %v2615 = vld [vmem:[%s165 + $0x13e] sm:$0xff]
      %s2616 = scalar_lea.vmem %s1, 32
      %v2617 = vld [vmem:[%s2616] sm:$0xf]
      %v2619 = vsel %vm246, %v2580, 0
      %v2622 = vsel %vm246, %v2581, 0
      %v2625 = vsel %vm246, %v2582, 0
      %v2628 = vsel %vm246, %v2583, 0
      %v2631 = vsel %vm246, %v2584, 0
      %v2634 = vsel %vm246, %v2585, 0
      %v2637 = vsel %vm246, %v2586, 0
      %v2640 = vsel %vm246, %v2587, 0
      %v2643 = vsel %vm246, %v2588, 0
      %v2646 = vsel %vm246, %v2589, 0
      %v2649 = vsel %vm246, %v2590, 0
      %v2652 = vsel %vm246, %v2591, 0
      %v2655 = vsel %vm246, %v2592, 0
      %v2658 = vsel %vm246, %v2593, 0
      %v2661 = vsel %vm246, %v2594, 0
      %v2664 = vsel %vm246, %v2595, 0
      %v2667 = vsel %vm246, %v2596, 0
      %v2670 = vsel %vm246, %v2597, 0
      %v2673 = vsel %vm246, %v2598, 0
      %v2676 = vsel %vm246, %v2599, 0
      %v2679 = vsel %vm246, %v2600, 0
      %v2682 = vsel %vm246, %v2601, 0
      %v2685 = vsel %vm246, %v2602, 0
      %v2688 = vsel %vm246, %v2603, 0
      %v2691 = vsel %vm246, %v2604, 0
      %v2694 = vsel %vm246, %v2605, 0
      %v2697 = vsel %vm246, %v2606, 0
      %v2700 = vsel %vm246, %v2607, 0
      %v2703 = vsel %vm246, %v2608, 0
      %v2706 = vsel %vm246, %v2609, 0
      %v2709 = vsel %vm246, %v2610, 0
      %v2712 = vsel %vm246, %v2611, 0
      %v2715 = vsel %vm246, %v2612, 0
      %v2718 = vsel %vm246, %v2613, 0
      %v2721 = vsel %vm246, %v2614, 0
      %v2724 = vsel %vm246, %v2615, 0
      %v2727 = vsel %vm355, %v2617, 0
      %2729 = vmatpush.msra.mxu0 0.0
      %2730 = vmatpush.msra.mxu0 0.0
      %2731 = vmatpush.msra.mxu0 0.0
      %2732 = vmatpush.msra.mxu0 0.0
      %2733 = vmatpush.msra.mxu0 0.0
      %2734 = vmatpush.msra.mxu0 0.0
      %2735 = vmatpush.msra.mxu0 0.0
      %2736 = vmatpush.msra.mxu0 0.0
      %2737 = vmatpush.msra.mxu0 0.0
      %2738 = vmatpush.msra.mxu0 0.0
      %2739 = vmatpush.msra.mxu0 0.0
      %2740 = vmatpush.msra.mxu0 0.0
      %2741 = vmatpush.msra.mxu0 0.0
      %2742 = vmatpush.msra.mxu0 0.0
      %2743 = vmatpush.msra.mxu0 0.0
      %2744 = vmatpush.msra.mxu0 %v2727
      %2745 = vmatmul.f32.gmra.mxu0 %v2619
      %v2746 = vpop.f32.mrf.mxu0
      %v2747 = vadd.f32 0.0, %v2746
      %2748 = vmatmul.f32.gmra.mxu0 %v2622
      %v2749 = vpop.f32.mrf.mxu0
      %v2750 = vadd.f32 0.0, %v2749
      %2751 = vmatmul.f32.gmra.mxu0 %v2625
      %v2752 = vpop.f32.mrf.mxu0
      %v2753 = vadd.f32 0.0, %v2752
      %2754 = vmatmul.f32.gmra.mxu0 %v2628
      %v2755 = vpop.f32.mrf.mxu0
      %v2756 = vadd.f32 0.0, %v2755
      %2757 = vmatmul.f32.gmra.mxu0 %v2631
      %v2758 = vpop.f32.mrf.mxu0
      %v2759 = vadd.f32 0.0, %v2758
      %2760 = vmatmul.f32.gmra.mxu0 %v2634
      %v2761 = vpop.f32.mrf.mxu0
      %v2762 = vadd.f32 0.0, %v2761
      %2763 = vmatmul.f32.gmra.mxu0 %v2637
      %v2764 = vpop.f32.mrf.mxu0
      %v2765 = vadd.f32 0.0, %v2764
      %2766 = vmatmul.f32.gmra.mxu0 %v2640
      %v2767 = vpop.f32.mrf.mxu0
      %v2768 = vadd.f32 0.0, %v2767
      %2769 = vmatmul.f32.gmra.mxu0 %v2643
      %v2770 = vpop.f32.mrf.mxu0
      %v2771 = vadd.f32 0.0, %v2770
      %2772 = vmatmul.f32.gmra.mxu0 %v2646
      %v2773 = vpop.f32.mrf.mxu0
      %v2774 = vadd.f32 0.0, %v2773
      %2775 = vmatmul.f32.gmra.mxu0 %v2649
      %v2776 = vpop.f32.mrf.mxu0
      %v2777 = vadd.f32 0.0, %v2776
      %2778 = vmatmul.f32.gmra.mxu0 %v2652
      %v2779 = vpop.f32.mrf.mxu0
      %v2780 = vadd.f32 0.0, %v2779
      %2781 = vmatmul.f32.gmra.mxu0 %v2655
      %v2782 = vpop.f32.mrf.mxu0
      %v2783 = vadd.f32 0.0, %v2782
      %2784 = vmatmul.f32.gmra.mxu0 %v2658
      %v2785 = vpop.f32.mrf.mxu0
      %v2786 = vadd.f32 0.0, %v2785
      %2787 = vmatmul.f32.gmra.mxu0 %v2661
      %v2788 = vpop.f32.mrf.mxu0
      %v2789 = vadd.f32 0.0, %v2788
      %2790 = vmatmul.f32.gmra.mxu0 %v2664
      %v2791 = vpop.f32.mrf.mxu0
      %v2792 = vadd.f32 0.0, %v2791
      %2793 = vmatmul.f32.gmra.mxu0 %v2667
      %v2794 = vpop.f32.mrf.mxu0
      %v2795 = vadd.f32 0.0, %v2794
      %2796 = vmatmul.f32.gmra.mxu0 %v2670
      %v2797 = vpop.f32.mrf.mxu0
      %v2798 = vadd.f32 0.0, %v2797
      %2799 = vmatmul.f32.gmra.mxu0 %v2673
      %v2800 = vpop.f32.mrf.mxu0
      %v2801 = vadd.f32 0.0, %v2800
      %2802 = vmatmul.f32.gmra.mxu0 %v2676
      %v2803 = vpop.f32.mrf.mxu0
      %v2804 = vadd.f32 0.0, %v2803
      %2805 = vmatmul.f32.gmra.mxu0 %v2679
      %v2806 = vpop.f32.mrf.mxu0
      %v2807 = vadd.f32 0.0, %v2806
      %2808 = vmatmul.f32.gmra.mxu0 %v2682
      %v2809 = vpop.f32.mrf.mxu0
      %v2810 = vadd.f32 0.0, %v2809
      %2811 = vmatmul.f32.gmra.mxu0 %v2685
      %v2812 = vpop.f32.mrf.mxu0
      %v2813 = vadd.f32 0.0, %v2812
      %2814 = vmatmul.f32.gmra.mxu0 %v2688
      %v2815 = vpop.f32.mrf.mxu0
      %v2816 = vadd.f32 0.0, %v2815
      %2817 = vmatmul.f32.gmra.mxu0 %v2691
      %v2818 = vpop.f32.mrf.mxu0
      %v2819 = vadd.f32 0.0, %v2818
      %2820 = vmatmul.f32.gmra.mxu0 %v2694
      %v2821 = vpop.f32.mrf.mxu0
      %v2822 = vadd.f32 0.0, %v2821
      %2823 = vmatmul.f32.gmra.mxu0 %v2697
      %v2824 = vpop.f32.mrf.mxu0
      %v2825 = vadd.f32 0.0, %v2824
      %2826 = vmatmul.f32.gmra.mxu0 %v2700
      %v2827 = vpop.f32.mrf.mxu0
      %v2828 = vadd.f32 0.0, %v2827
      %2829 = vmatmul.f32.gmra.mxu0 %v2703
      %v2830 = vpop.f32.mrf.mxu0
      %v2831 = vadd.f32 0.0, %v2830
      %2832 = vmatmul.f32.gmra.mxu0 %v2706
      %v2833 = vpop.f32.mrf.mxu0
      %v2834 = vadd.f32 0.0, %v2833
      %2835 = vmatmul.f32.gmra.mxu0 %v2709
      %v2836 = vpop.f32.mrf.mxu0
      %v2837 = vadd.f32 0.0, %v2836
      %2838 = vmatmul.f32.gmra.mxu0 %v2712
      %v2839 = vpop.f32.mrf.mxu0
      %v2840 = vadd.f32 0.0, %v2839
      %2841 = vmatmul.f32.gmra.mxu0 %v2715
      %v2842 = vpop.f32.mrf.mxu0
      %v2843 = vadd.f32 0.0, %v2842
      %2844 = vmatmul.f32.gmra.mxu0 %v2718
      %v2845 = vpop.f32.mrf.mxu0
      %v2846 = vadd.f32 0.0, %v2845
      %2847 = vmatmul.f32.gmra.mxu0 %v2721
      %v2848 = vpop.f32.mrf.mxu0
      %v2849 = vadd.f32 0.0, %v2848
      %2850 = vmatmul.f32.gmra.mxu0 %v2724
      %v2851 = vpop.f32.mrf.mxu0
      %v2852 = vadd.f32 0.0, %v2851
      %2853 = vdwg.mxu0
      %v2854 = vadd.f32 %v2544, %v2747
      %v2855 = vadd.f32 %v2545, %v2750
      %v2856 = vadd.f32 %v2546, %v2753
      %v2857 = vadd.f32 %v2547, %v2756
      %v2858 = vadd.f32 %v2548, %v2759
      %v2859 = vadd.f32 %v2549, %v2762
      %v2860 = vadd.f32 %v2550, %v2765
      %v2861 = vadd.f32 %v2551, %v2768
      %v2862 = vadd.f32 %v2552, %v2771
      %v2863 = vadd.f32 %v2553, %v2774
      %v2864 = vadd.f32 %v2554, %v2777
      %v2865 = vadd.f32 %v2555, %v2780
      %v2866 = vadd.f32 %v2556, %v2783
      %v2867 = vadd.f32 %v2557, %v2786
      %v2868 = vadd.f32 %v2558, %v2789
      %v2869 = vadd.f32 %v2559, %v2792
      %v2870 = vadd.f32 %v2560, %v2795
      %v2871 = vadd.f32 %v2561, %v2798
      %v2872 = vadd.f32 %v2562, %v2801
      %v2873 = vadd.f32 %v2563, %v2804
      %v2874 = vadd.f32 %v2564, %v2807
      %v2875 = vadd.f32 %v2565, %v2810
      %v2876 = vadd.f32 %v2566, %v2813
      %v2877 = vadd.f32 %v2567, %v2816
      %v2878 = vadd.f32 %v2568, %v2819
      %v2879 = vadd.f32 %v2569, %v2822
      %v2880 = vadd.f32 %v2570, %v2825
      %v2881 = vadd.f32 %v2571, %v2828
      %v2882 = vadd.f32 %v2572, %v2831
      %v2883 = vadd.f32 %v2573, %v2834
      %v2884 = vadd.f32 %v2574, %v2837
      %v2885 = vadd.f32 %v2575, %v2840
      %v2886 = vadd.f32 %v2576, %v2843
      %v2887 = vadd.f32 %v2577, %v2846
      %v2888 = vadd.f32 %v2578, %v2849
      %v2889 = vadd.f32 %v2579, %v2852
      %v2890 = vld [vmem:[%s2] sm:$0x1]
      %v2892 = vperm.slane %v2890, 0
      %v2894 = vadd.f32 %v2854, %v2892
      %v2895 = vadd.f32 %v2855, %v2892
      %v2896 = vadd.f32 %v2856, %v2892
      %v2897 = vadd.f32 %v2857, %v2892
      %v2898 = vadd.f32 %v2858, %v2892
      %v2899 = vadd.f32 %v2859, %v2892
      %v2900 = vadd.f32 %v2860, %v2892
      %v2901 = vadd.f32 %v2861, %v2892
      %v2902 = vadd.f32 %v2862, %v2892
      %v2903 = vadd.f32 %v2863, %v2892
      %v2904 = vadd.f32 %v2864, %v2892
      %v2905 = vadd.f32 %v2865, %v2892
      %v2906 = vadd.f32 %v2866, %v2892
      %v2907 = vadd.f32 %v2867, %v2892
      %v2908 = vadd.f32 %v2868, %v2892
      %v2909 = vadd.f32 %v2869, %v2892
      %v2910 = vadd.f32 %v2870, %v2892
      %v2911 = vadd.f32 %v2871, %v2892
      %v2912 = vadd.f32 %v2872, %v2892
      %v2913 = vadd.f32 %v2873, %v2892
      %v2914 = vadd.f32 %v2874, %v2892
      %v2915 = vadd.f32 %v2875, %v2892
      %v2916 = vadd.f32 %v2876, %v2892
      %v2917 = vadd.f32 %v2877, %v2892
      %v2918 = vadd.f32 %v2878, %v2892
      %v2919 = vadd.f32 %v2879, %v2892
      %v2920 = vadd.f32 %v2880, %v2892
      %v2921 = vadd.f32 %v2881, %v2892
      %v2922 = vadd.f32 %v2882, %v2892
      %v2923 = vadd.f32 %v2883, %v2892
      %v2924 = vadd.f32 %v2884, %v2892
      %v2925 = vadd.f32 %v2885, %v2892
      %v2926 = vadd.f32 %v2886, %v2892
      %v2927 = vadd.f32 %v2887, %v2892
      %v2928 = vadd.f32 %v2888, %v2892
      %v2929 = vadd.f32 %v2889, %v2892
      %v2930 = vmax.f32 %v2894, 0.0
      %v2931 = vmax.f32 %v2895, 0.0
      %v2932 = vmax.f32 %v2896, 0.0
      %v2933 = vmax.f32 %v2897, 0.0
      %v2934 = vmax.f32 %v2898, 0.0
      %v2935 = vmax.f32 %v2899, 0.0
      %v2936 = vmax.f32 %v2900, 0.0
      %v2937 = vmax.f32 %v2901, 0.0
      %v2938 = vmax.f32 %v2902, 0.0
      %v2939 = vmax.f32 %v2903, 0.0
      %v2940 = vmax.f32 %v2904, 0.0
      %v2941 = vmax.f32 %v2905, 0.0
      %v2942 = vmax.f32 %v2906, 0.0
      %v2943 = vmax.f32 %v2907, 0.0
      %v2944 = vmax.f32 %v2908, 0.0
      %v2945 = vmax.f32 %v2909, 0.0
      %v2946 = vmax.f32 %v2910, 0.0
      %v2947 = vmax.f32 %v2911, 0.0
      %v2948 = vmax.f32 %v2912, 0.0
      %v2949 = vmax.f32 %v2913, 0.0
      %v2950 = vmax.f32 %v2914, 0.0
      %v2951 = vmax.f32 %v2915, 0.0
      %v2952 = vmax.f32 %v2916, 0.0
      %v2953 = vmax.f32 %v2917, 0.0
      %v2954 = vmax.f32 %v2918, 0.0
      %v2955 = vmax.f32 %v2919, 0.0
      %v2956 = vmax.f32 %v2920, 0.0
      %v2957 = vmax.f32 %v2921, 0.0
      %v2958 = vmax.f32 %v2922, 0.0
      %v2959 = vmax.f32 %v2923, 0.0
      %v2960 = vmax.f32 %v2924, 0.0
      %v2961 = vmax.f32 %v2925, 0.0
      %v2962 = vmax.f32 %v2926, 0.0
      %v2963 = vmax.f32 %v2927, 0.0
      %v2964 = vmax.f32 %v2928, 0.0
      %v2965 = vmax.f32 %v2929, 0.0
      %vm2966 = vcmask 64512
      %2967 = vst.msk [vmem:[%s170] sm:$0xff] %vm2966, %v2930
      %2968 = vst.msk [vmem:[%s170 + $0x8] sm:$0xff] %vm2966, %v2931
      %2969 = vst.msk [vmem:[%s170 + $0x10] sm:$0xff] %vm2966, %v2932
      %2970 = vst.msk [vmem:[%s170 + $0x18] sm:$0xff] %vm2966, %v2933
      %2971 = vst.msk [vmem:[%s170 + $0x20] sm:$0xff] %vm2966, %v2934
      %2972 = vst.msk [vmem:[%s170 + $0x28] sm:$0xff] %vm2966, %v2935
      %2973 = vst.msk [vmem:[%s170 + $0x30] sm:$0xff] %vm2966, %v2936
      %2974 = vst.msk [vmem:[%s170 + $0x38] sm:$0xff] %vm2966, %v2937
      %2975 = vst.msk [vmem:[%s170 + $0x40] sm:$0xff] %vm2966, %v2938
      %2976 = vst.msk [vmem:[%s170 + $0x48] sm:$0xff] %vm2966, %v2939
      %2977 = vst.msk [vmem:[%s170 + $0x50] sm:$0xff] %vm2966, %v2940
      %2978 = vst.msk [vmem:[%s170 + $0x58] sm:$0xff] %vm2966, %v2941
      %2979 = vst.msk [vmem:[%s170 + $0x60] sm:$0xff] %vm2966, %v2942
      %2980 = vst.msk [vmem:[%s170 + $0x68] sm:$0xff] %vm2966, %v2943
      %2981 = vst.msk [vmem:[%s170 + $0x70] sm:$0xff] %vm2966, %v2944
      %2982 = vst.msk [vmem:[%s170 + $0x78] sm:$0xff] %vm2966, %v2945
      %2983 = vst.msk [vmem:[%s170 + $0x80] sm:$0xff] %vm2966, %v2946
      %2984 = vst.msk [vmem:[%s170 + $0x88] sm:$0xff] %vm2966, %v2947
      %2985 = vst.msk [vmem:[%s170 + $0x90] sm:$0xff] %vm2966, %v2948
      %2986 = vst.msk [vmem:[%s170 + $0x98] sm:$0xff] %vm2966, %v2949
      %2987 = vst.msk [vmem:[%s170 + $0xa0] sm:$0xff] %vm2966, %v2950
      %2988 = vst.msk [vmem:[%s170 + $0xa8] sm:$0xff] %vm2966, %v2951
      %2989 = vst.msk [vmem:[%s170 + $0xb0] sm:$0xff] %vm2966, %v2952
      %2990 = vst.msk [vmem:[%s170 + $0xb8] sm:$0xff] %vm2966, %v2953
      %2991 = vst.msk [vmem:[%s170 + $0xc0] sm:$0xff] %vm2966, %v2954
      %2992 = vst.msk [vmem:[%s170 + $0xc8] sm:$0xff] %vm2966, %v2955
      %2993 = vst.msk [vmem:[%s170 + $0xd0] sm:$0xff] %vm2966, %v2956
      %2994 = vst.msk [vmem:[%s170 + $0xd8] sm:$0xff] %vm2966, %v2957
      %2995 = vst.msk [vmem:[%s170 + $0xe0] sm:$0xff] %vm2966, %v2958
      %2996 = vst.msk [vmem:[%s170 + $0xe8] sm:$0xff] %vm2966, %v2959
      %2997 = vst.msk [vmem:[%s170 + $0xf0] sm:$0xff] %vm2966, %v2960
      %2998 = vst.msk [vmem:[%s170 + $0xf8] sm:$0xff] %vm2966, %v2961
      %2999 = vst.msk [vmem:[%s170 + $0x100] sm:$0xff] %vm2966, %v2962
      %3000 = vst.msk [vmem:[%s170 + $0x108] sm:$0xff] %vm2966, %v2963
      %3001 = vst.msk [vmem:[%s170 + $0x110] sm:$0xff] %vm2966, %v2964
      %3002 = vst.msk [vmem:[%s170 + $0x118] sm:$0xff] %vm2966, %v2965
      %p3003 = scmp.lt.s32.totalorder %s14, 1
      %s3004 = scalar_select %p3003, %s14, 1
      %s3005 = smul.addr %s3004, 36
      %s3006 = smul.addr %s3005, 8
      %s3007 = scalar_lea.vmem %s3, %s3006
      // Predicated region
      $region33: #{tpu_custom_call.1} parent=31 // pred_check
        %p3008 = pneg %p100
      $region34: #{tpu_custom_call.1} parent=31 // pred_check_branch
        %3010 = sbr.rel (%p3008) target = $region36
      $region35: #{tpu_custom_call.1} parent=31 // pred_region
        _
      $region36: #{tpu_custom_call.1} parent=31 // pred_fallthru
        _
    $region32: #{tpu_custom_call.1} parent=5 // pred_fallthru
      _
    %p3011 = scmp.le.s32.totalorder 2, %s9
    // Predicated region
    $region37: #{tpu_custom_call.1} parent=5 // pred_check
      %p3012 = pneg %p3011
    $region38: #{tpu_custom_call.1} parent=5 // pred_check_branch
      %3014 = sbr.rel (%p3012) target = $region40
    $region39: #{tpu_custom_call.1} parent=5 // pred_region
      %s3015 = ssub.s32 %s9, 2
      // Predicated region
      $region41: #{tpu_custom_call.1} parent=39 // pred_check
        %p3016 = pneg %p106
      $region42: #{tpu_custom_call.1} parent=39 // pred_check_branch
        %3018 = sbr.rel (%p3016) target = $region44
      $region43: #{tpu_custom_call.1} parent=39 // pred_region
        %p3019 = scmp.lt.s32.totalorder %s15, 1
        %s3020 = scalar_select %p3019, %s15, 1
        %s3021 = smul.addr %s3020, 36
        %s3022 = smul.addr %s3021, 8
        %s3023 = scalar_lea.vmem %s3, %s3022
      $region44: #{tpu_custom_call.1} parent=39 // pred_fallthru
        _
    $region40: #{tpu_custom_call.1} parent=5 // pred_fallthru
      _
  $region6: #{tpu_custom_call.1} parent=0 // loop_footer
    %s13 = sadd.s32 1, %s9
  $region7: #{tpu_custom_call.1} parent=0 // loop_footer_branch
    %8 = sbr.rel target = $region3
  $region8: #{tpu_custom_call.1} parent=0 // loop_exit
    _

</llo_original>
